<compile_context>
chip_gen: v7x
topology: tpu7x:2x2x1
jax: 0.10.0
libtpu: 0.0.40
codegen_flags: <defaults>
</compile_context>

<pallas_src>
import math

import jax
import jax.numpy as jnp
from jax.experimental import pallas as pl
from jax.experimental.pallas import tpu as pltpu

N_OBS = 12
N_ACT = 8
HIDDEN = 512

N_PAD = 128    # n_actions padded to one full lane width (lane-dense stores)
TM_MAX = 512   # batch tile; big enough to amortize grid-step overhead on all gens


def _leaky_relu(x, negative_slope=0.01):
    # F.leaky_relu default negative_slope = 0.01
    return jnp.where(x >= 0, x, negative_slope * x)


def dqn_kernel(x_ref,
               w1_ref, b1_ref,
               w2_ref, b2_ref,
               w3_ref, b3_ref,
               w4_ref, b4_ref,
               out_ref):
    # One batch tile per grid step. bf16 weights + f32 biases use constant
    # index_maps so they stay VMEM-resident across the whole grid. x arrives
    # already in bf16; hidden activations are f32 and cast to bf16 right at
    # each MXU matmul, accumulating in f32.
    h = jnp.dot(x_ref[...], w1_ref[...],
                preferred_element_type=jnp.float32) + b1_ref[...]   # (TM, 512) f32
    h = _leaky_relu(h)

    h = jnp.dot(h.astype(jnp.bfloat16), w2_ref[...],
                preferred_element_type=jnp.float32) + b2_ref[...]
    h = _leaky_relu(h)

    h = jnp.dot(h.astype(jnp.bfloat16), w3_ref[...],
                preferred_element_type=jnp.float32) + b3_ref[...]
    h = _leaky_relu(h)

    h = jnp.dot(h.astype(jnp.bfloat16), w4_ref[...],
                preferred_element_type=jnp.float32) + b4_ref[...]
    out_ref[...] = jnp.tanh(h)                                       # (TM, N_PAD) f32


def _round_up(n, m):
    return ((n + m - 1) // m) * m


def pack_params(params):
    """One-time prep: cast weights to bf16 and pad the last layer to a full lane.

    Do this once at agent init (not per call) so weight conversion is amortized.
    """
    w4 = jnp.zeros((HIDDEN, N_PAD), jnp.bfloat16)
    w4 = w4.at[:, :N_ACT].set(params["w4"].astype(jnp.bfloat16))
    b4 = jnp.zeros((1, N_PAD), jnp.float32)
    b4 = b4.at[:, :N_ACT].set(params["b4"])
    return {
        "w1": params["w1"].astype(jnp.bfloat16), "b1": params["b1"],
        "w2": params["w2"].astype(jnp.bfloat16), "b2": params["b2"],
        "w3": params["w3"].astype(jnp.bfloat16), "b3": params["b3"],
        "w4": w4, "b4": b4,
    }


@jax.jit
def dqn_forward(x, packed):
    """x: (B, N_OBS) f32. packed: output of pack_params. Returns (B, N_ACT) f32."""
    B = x.shape[0]

    # Tile selection:
    #  * tiny batches (<=128): one full-batch tile (block == full array).
    #  * larger batches: >= 2 tiles so the parallel axis shards across v7x's
    #    two TensorCores, tiles are 128-aligned (no ragged MXU passes on v5e),
    #    capped at TM_MAX.
    B_pad = _round_up(B, 16)
    if B_pad <= 128:
        TM = B_pad
    else:
        TM = min(TM_MAX, _round_up((B_pad + 1) // 2, 128))
        B_pad = _round_up(B_pad, TM)
    num_tiles = B_pad // TM

    # bf16 input stream (halves input DMA); only batch padding, no feature pad.
    x_p = x.astype(jnp.bfloat16)
    if B_pad != B:
        x_p = jnp.pad(x_p, ((0, B_pad - B), (0, 0)))

    weights = (packed["w1"], packed["b1"],
               packed["w2"], packed["b2"],
               packed["w3"], packed["b3"],
               packed["w4"], packed["b4"])

    def resident(a):
        # Full-array block with a constant index_map -> stays in VMEM across grid.
        return pl.BlockSpec(a.shape, lambda i: (0,) * a.ndim)

    flops = 2 * B_pad * (N_OBS * HIDDEN + 2 * HIDDEN * HIDDEN + HIDDEN * N_PAD)
    bytes_accessed = (sum(int(a.size) * a.dtype.itemsize for a in weights)
                      + B_pad * N_OBS * 2 + B_pad * N_PAD * 4)

    out_p = pl.pallas_call(
        dqn_kernel,
        out_shape=jax.ShapeDtypeStruct((B_pad, N_PAD), jnp.float32),
        grid_spec=pltpu.PrefetchScalarGridSpec(
            num_scalar_prefetch=0,
            grid=(num_tiles,),
            in_specs=[pl.BlockSpec((TM, N_OBS), lambda i: (i, 0))]
                     + [resident(a) for a in weights],
            out_specs=pl.BlockSpec((TM, N_PAD), lambda i: (i, 0)),
        ),
        compiler_params=pltpu.CompilerParams(
            dimension_semantics=("parallel",),
            vmem_limit_bytes=32 << 20,
        ),
        cost_estimate=pl.CostEstimate(
            flops=flops,
            transcendentals=B_pad * N_PAD,
            bytes_accessed=bytes_accessed,
        ),
    )(x_p, *weights)

    # Slice away batch / action padding (fuses with downstream argmax/gather
    # under the same jit; large-batch consumers can use the padded slab directly).
    return out_p[:B, :N_ACT]


def xavier_uniform(key, fan_in, fan_out):
    # matches torch.nn.init.xavier_uniform_ (gain = 1.0); stored as (in, out)
    bound = math.sqrt(6.0 / (fan_in + fan_out))
    return jax.random.uniform(key, (fan_in, fan_out), jnp.float32, -bound, bound)


def make_params(key, n_observations=N_OBS, n_actions=N_ACT, hidden=HIDDEN):
    k1, k2, k3, k4 = jax.random.split(key, 4)
    return {
        "w1": xavier_uniform(k1, n_observations, hidden),
        "b1": jnp.full((1, hidden), 0.01, jnp.float32),
        "w2": xavier_uniform(k2, hidden, hidden),
        "b2": jnp.full((1, hidden), 0.01, jnp.float32),
        "w3": xavier_uniform(k3, hidden, hidden),
        "b3": jnp.full((1, hidden), 0.01, jnp.float32),
        "w4": xavier_uniform(k4, hidden, n_actions),
        "b4": jnp.full((1, n_actions), 0.01, jnp.float32),
    }


def dqn_reference_bf16(x, p):
    # Matched-precision reference: bf16 weights/activation inputs to each matmul,
    # f32 accumulation — same numerics policy as the kernel.
    def layer(h, w, b):
        return jnp.dot(h.astype(jnp.bfloat16), w.astype(jnp.bfloat16),
                       preferred_element_type=jnp.float32) + b
    h = _leaky_relu(layer(x, p["w1"], p["b1"]))
    h = _leaky_relu(layer(h, p["w2"], p["b2"]))
    h = _leaky_relu(layer(h, p["w3"], p["b3"]))
    return jnp.tanh(layer(h, p["w4"], p["b4"]))


if __name__ == "__main__":
    key = jax.random.PRNGKey(0)
    k_param, k_x = jax.random.split(key)

    batch = 2
    params = make_params(k_param, N_OBS, N_ACT, HIDDEN)
    packed = pack_params(params)          # one-time weight prep (bf16 + lane padding)
    x = jax.random.normal(k_x, (batch, N_OBS), jnp.float32)

    out = dqn_forward(x, packed)
    out = jax.block_until_ready(out)

    assert out.shape == (batch, N_ACT)
    ref = dqn_reference_bf16(x, params)
    assert jnp.allclose(out, ref, atol=5e-3, rtol=5e-3), "mismatch vs reference"

    # NOTE: final tanh matches the provided module (bounds Q-values to [-1, 1]).
    print("KERNEL_OK")
</pallas_src>

<mosaic_0001>
module attributes {stable_mosaic.version = 11 : i64} {
  func.func @dqn_kernel(%arg0: i32, %arg1: memref<16x12xbf16, #tpu.memory_space<vmem>>, %arg2: memref<12x512xbf16, #tpu.memory_space<vmem>>, %arg3: memref<1x512xf32, #tpu.memory_space<vmem>>, %arg4: memref<512x512xbf16, #tpu.memory_space<vmem>>, %arg5: memref<1x512xf32, #tpu.memory_space<vmem>>, %arg6: memref<512x512xbf16, #tpu.memory_space<vmem>>, %arg7: memref<1x512xf32, #tpu.memory_space<vmem>>, %arg8: memref<512x128xbf16, #tpu.memory_space<vmem>>, %arg9: memref<1x128xf32, #tpu.memory_space<vmem>>, %arg10: memref<16x128xf32, #tpu.memory_space<vmem>>) attributes {dimension_semantics = [#tpu.dimension_semantics<parallel>], iteration_bounds = array<i64: 1>, scalar_prefetch = 0 : i64, scratch_operands = 0 : i64, tpu.core_type = #tpu.core_type<tc>, window_params = [{transform_indices = @transform_0, window_bounds = array<i64: 16, 12>}, {pipeline_mode = #tpu.pipeline_mode<synchronous>, transform_indices = @transform_1, window_bounds = array<i64: 12, 512>}, {pipeline_mode = #tpu.pipeline_mode<synchronous>, transform_indices = @transform_2, window_bounds = array<i64: 1, 512>}, {pipeline_mode = #tpu.pipeline_mode<synchronous>, transform_indices = @transform_3, window_bounds = array<i64: 512, 512>}, {pipeline_mode = #tpu.pipeline_mode<synchronous>, transform_indices = @transform_4, window_bounds = array<i64: 1, 512>}, {pipeline_mode = #tpu.pipeline_mode<synchronous>, transform_indices = @transform_5, window_bounds = array<i64: 512, 512>}, {pipeline_mode = #tpu.pipeline_mode<synchronous>, transform_indices = @transform_6, window_bounds = array<i64: 1, 512>}, {pipeline_mode = #tpu.pipeline_mode<synchronous>, transform_indices = @transform_7, window_bounds = array<i64: 512, 128>}, {pipeline_mode = #tpu.pipeline_mode<synchronous>, transform_indices = @transform_8, window_bounds = array<i64: 1, 128>}, {transform_indices = @transform_9, window_bounds = array<i64: 16, 128>}]} {
    %c0 = arith.constant 0 : index
    %c0_0 = arith.constant 0 : index
    %0 = vector.load %arg1[%c0, %c0_0] : memref<16x12xbf16, #tpu.memory_space<vmem>>, vector<16x12xbf16>
    %c0_1 = arith.constant 0 : index
    %c0_2 = arith.constant 0 : index
    %1 = vector.load %arg2[%c0_1, %c0_2] : memref<12x512xbf16, #tpu.memory_space<vmem>>, vector<12x512xbf16>
    %cst = arith.constant dense<0.000000e+00> : vector<16x512xf32>
    %2 = tpu.matmul %0, %1, %cst {dimension_numbers = #tpu.dot_dimension_numbers<[1], [0], [0], [1], [0, 0, 1, 1], [], []>} : vector<16x12xbf16>, vector<12x512xbf16>, vector<16x512xf32> -> vector<16x512xf32>
    %c0_3 = arith.constant 0 : index
    %c0_4 = arith.constant 0 : index
    %3 = vector.load %arg3[%c0_3, %c0_4] : memref<1x512xf32, #tpu.memory_space<vmem>>, vector<1x512xf32>
    %4 = vector.broadcast %3 : vector<1x512xf32> to vector<16x512xf32>
    %5 = arith.addf %2, %4 : vector<16x512xf32>
    %cst_5 = arith.constant 0.000000e+00 : f32
    %6 = vector.broadcast %cst_5 : f32 to vector<16x512xf32>
    %7 = arith.cmpf oge, %5, %6 : vector<16x512xf32>
    %cst_6 = arith.constant 0.00999999977 : f32
    %8 = vector.broadcast %cst_6 : f32 to vector<16x512xf32>
    %9 = arith.mulf %8, %5 : vector<16x512xf32>
    %10 = arith.select %7, %5, %9 : vector<16x512xi1>, vector<16x512xf32>
    %11 = arith.truncf %10 : vector<16x512xf32> to vector<16x512xbf16>
    %c0_7 = arith.constant 0 : index
    %c0_8 = arith.constant 0 : index
    %12 = vector.load %arg4[%c0_7, %c0_8] : memref<512x512xbf16, #tpu.memory_space<vmem>>, vector<512x512xbf16>
    %cst_9 = arith.constant dense<0.000000e+00> : vector<16x512xf32>
    %13 = tpu.matmul %11, %12, %cst_9 {dimension_numbers = #tpu.dot_dimension_numbers<[1], [0], [0], [1], [0, 0, 1, 1], [], []>} : vector<16x512xbf16>, vector<512x512xbf16>, vector<16x512xf32> -> vector<16x512xf32>
    %c0_10 = arith.constant 0 : index
    %c0_11 = arith.constant 0 : index
    %14 = vector.load %arg5[%c0_10, %c0_11] : memref<1x512xf32, #tpu.memory_space<vmem>>, vector<1x512xf32>
    %15 = vector.broadcast %14 : vector<1x512xf32> to vector<16x512xf32>
    %16 = arith.addf %13, %15 : vector<16x512xf32>
    %cst_12 = arith.constant 0.000000e+00 : f32
    %17 = vector.broadcast %cst_12 : f32 to vector<16x512xf32>
    %18 = arith.cmpf oge, %16, %17 : vector<16x512xf32>
    %cst_13 = arith.constant 0.00999999977 : f32
    %19 = vector.broadcast %cst_13 : f32 to vector<16x512xf32>
    %20 = arith.mulf %19, %16 : vector<16x512xf32>
    %21 = arith.select %18, %16, %20 : vector<16x512xi1>, vector<16x512xf32>
    %22 = arith.truncf %21 : vector<16x512xf32> to vector<16x512xbf16>
    %c0_14 = arith.constant 0 : index
    %c0_15 = arith.constant 0 : index
    %23 = vector.load %arg6[%c0_14, %c0_15] : memref<512x512xbf16, #tpu.memory_space<vmem>>, vector<512x512xbf16>
    %cst_16 = arith.constant dense<0.000000e+00> : vector<16x512xf32>
    %24 = tpu.matmul %22, %23, %cst_16 {dimension_numbers = #tpu.dot_dimension_numbers<[1], [0], [0], [1], [0, 0, 1, 1], [], []>} : vector<16x512xbf16>, vector<512x512xbf16>, vector<16x512xf32> -> vector<16x512xf32>
    %c0_17 = arith.constant 0 : index
    %c0_18 = arith.constant 0 : index
    %25 = vector.load %arg7[%c0_17, %c0_18] : memref<1x512xf32, #tpu.memory_space<vmem>>, vector<1x512xf32>
    %26 = vector.broadcast %25 : vector<1x512xf32> to vector<16x512xf32>
    %27 = arith.addf %24, %26 : vector<16x512xf32>
    %cst_19 = arith.constant 0.000000e+00 : f32
    %28 = vector.broadcast %cst_19 : f32 to vector<16x512xf32>
    %29 = arith.cmpf oge, %27, %28 : vector<16x512xf32>
    %cst_20 = arith.constant 0.00999999977 : f32
    %30 = vector.broadcast %cst_20 : f32 to vector<16x512xf32>
    %31 = arith.mulf %30, %27 : vector<16x512xf32>
    %32 = arith.select %29, %27, %31 : vector<16x512xi1>, vector<16x512xf32>
    %33 = arith.truncf %32 : vector<16x512xf32> to vector<16x512xbf16>
    %c0_21 = arith.constant 0 : index
    %c0_22 = arith.constant 0 : index
    %34 = vector.load %arg8[%c0_21, %c0_22] : memref<512x128xbf16, #tpu.memory_space<vmem>>, vector<512x128xbf16>
    %cst_23 = arith.constant dense<0.000000e+00> : vector<16x128xf32>
    %35 = tpu.matmul %33, %34, %cst_23 {dimension_numbers = #tpu.dot_dimension_numbers<[1], [0], [0], [1], [0, 0, 1, 1], [], []>} : vector<16x512xbf16>, vector<512x128xbf16>, vector<16x128xf32> -> vector<16x128xf32>
    %c0_24 = arith.constant 0 : index
    %c0_25 = arith.constant 0 : index
    %36 = vector.load %arg9[%c0_24, %c0_25] : memref<1x128xf32, #tpu.memory_space<vmem>>, vector<1x128xf32>
    %37 = vector.broadcast %36 : vector<1x128xf32> to vector<16x128xf32>
    %38 = arith.addf %35, %37 : vector<16x128xf32>
    %39 = math.tanh %38 : vector<16x128xf32>
    %c0_26 = arith.constant 0 : index
    %c0_27 = arith.constant 0 : index
    %40 = vector.load %arg10[%c0_26, %c0_27] : memref<16x128xf32, #tpu.memory_space<vmem>>, vector<16x128xf32>
    tpu.vector_store %arg10[%c0_26, %c0_27], %39 {strides = array<i32>} : memref<16x128xf32, #tpu.memory_space<vmem>>, vector<16x128xf32>,
    return
  }
  func.func @transform_0(%arg0: i32) -> (i32, i32) {
    %c0_i32 = arith.constant 0 : i32
    %c0_i32_0 = arith.constant 0 : i32
    return %arg0, %c0_i32 : i32, i32
  }
  func.func @transform_1(%arg0: i32) -> (i32, i32) {
    %c0_i32 = arith.constant 0 : i32
    %c0_i32_0 = arith.constant 0 : i32
    %c0_i32_1 = arith.constant 0 : i32
    return %c0_i32, %c0_i32_0 : i32, i32
  }
  func.func @transform_2(%arg0: i32) -> (i32, i32) {
    %c0_i32 = arith.constant 0 : i32
    %c0_i32_0 = arith.constant 0 : i32
    %c0_i32_1 = arith.constant 0 : i32
    return %c0_i32, %c0_i32_0 : i32, i32
  }
  func.func @transform_3(%arg0: i32) -> (i32, i32) {
    %c0_i32 = arith.constant 0 : i32
    %c0_i32_0 = arith.constant 0 : i32
    %c0_i32_1 = arith.constant 0 : i32
    return %c0_i32, %c0_i32_0 : i32, i32
  }
  func.func @transform_4(%arg0: i32) -> (i32, i32) {
    %c0_i32 = arith.constant 0 : i32
    %c0_i32_0 = arith.constant 0 : i32
    %c0_i32_1 = arith.constant 0 : i32
    return %c0_i32, %c0_i32_0 : i32, i32
  }
  func.func @transform_5(%arg0: i32) -> (i32, i32) {
    %c0_i32 = arith.constant 0 : i32
    %c0_i32_0 = arith.constant 0 : i32
    %c0_i32_1 = arith.constant 0 : i32
    return %c0_i32, %c0_i32_0 : i32, i32
  }
  func.func @transform_6(%arg0: i32) -> (i32, i32) {
    %c0_i32 = arith.constant 0 : i32
    %c0_i32_0 = arith.constant 0 : i32
    %c0_i32_1 = arith.constant 0 : i32
    return %c0_i32, %c0_i32_0 : i32, i32
  }
  func.func @transform_7(%arg0: i32) -> (i32, i32) {
    %c0_i32 = arith.constant 0 : i32
    %c0_i32_0 = arith.constant 0 : i32
    %c0_i32_1 = arith.constant 0 : i32
    return %c0_i32, %c0_i32_0 : i32, i32
  }
  func.func @transform_8(%arg0: i32) -> (i32, i32) {
    %c0_i32 = arith.constant 0 : i32
    %c0_i32_0 = arith.constant 0 : i32
    %c0_i32_1 = arith.constant 0 : i32
    return %c0_i32, %c0_i32_0 : i32, i32
  }
  func.func @transform_9(%arg0: i32) -> (i32, i32) {
    %c0_i32 = arith.constant 0 : i32
    %c0_i32_0 = arith.constant 0 : i32
    return %arg0, %c0_i32 : i32, i32
  }
}

</mosaic_0001>

<llo_original>
// kernel: dqn_forward.1
$region0: #{dqn_forward.1}
  #allocation0 [shape = 'u32[]', space=smem, size = 0x4, offset = 0x4, fixed_abs, tag = 'smem constant byte address 0x4 - core index']
  #allocation1 [shape = 'u32[144,128]{1,0:T(1,128)}', space=vmem, size = 0x12000, scoped, tag = 'internal scratch']
  %s0 = inlined_call_operand.vmem [shape: bf16[16,12], index: 0, kind: input, shape index: {}]
  %s1 = inlined_call_operand.vmem [shape: bf16[12,512], index: 1, kind: input, shape index: {}]
  %s2 = inlined_call_operand.hbm [shape: f32[1,512], index: 2, kind: input, shape index: {}]
  %s3 = inlined_call_operand.hbm [shape: bf16[512,512], index: 3, kind: input, shape index: {}]
  %s4 = inlined_call_operand.hbm [shape: f32[1,512], index: 4, kind: input, shape index: {}]
  %s5 = inlined_call_operand.hbm [shape: bf16[512,512], index: 5, kind: input, shape index: {}]
  %s6 = inlined_call_operand.hbm [shape: f32[1,512], index: 6, kind: input, shape index: {}]
  %s7 = inlined_call_operand.hbm [shape: bf16[512,128], index: 7, kind: input, shape index: {}]
  %s8 = inlined_call_operand.hbm [shape: f32[1,128], index: 8, kind: input, shape index: {}]
  %s9 = inlined_call_operand.vmem [shape: f32[16,128], index: 9, kind: output, shape index: {}]
  %s10 = sld [smem:[#allocation0]]
  $region74: #{dqn_forward.1} parent=0
    _
  %s12 = ssub.s32 1, %s10
  %s13 = scalar_select 0, %s12, %s10
  $region1: #{dqn_forward.1} parent=0
    #allocation2 [shape = 'u8[2048]{0}', space=vmem, size = 0x800, scoped, tag = 'input window, operand 2, single buffered']
    #allocation3 [shape = 's32[1]{0}', space=sflag, size = 0x4, scoped, tag = 'scoped memory for dqn_forward.1']
    #allocation4 [shape = 'u8[524288]{0}', space=vmem, size = 0x80000, scoped, tag = 'input window, operand 3, single buffered']
    #allocation5 [shape = 's32[1]{0}', space=sflag, size = 0x4, scoped, tag = 'scoped memory for dqn_forward.1']
    #allocation6 [shape = 'u8[2048]{0}', space=vmem, size = 0x800, scoped, tag = 'input window, operand 4, single buffered']
    #allocation7 [shape = 'u8[524288]{0}', space=vmem, size = 0x80000, scoped, tag = 'input window, operand 5, single buffered']
    #allocation8 [shape = 's32[1]{0}', space=sflag, size = 0x4, scoped, tag = 'scoped memory for dqn_forward.1']
    #allocation9 [shape = 'u8[2048]{0}', space=vmem, size = 0x800, scoped, tag = 'input window, operand 6, single buffered']
    #allocation10 [shape = 'u8[131072]{0}', space=vmem, size = 0x20000, scoped, tag = 'input window, operand 7, single buffered']
    #allocation11 [shape = 's32[1]{0}', space=sflag, size = 0x4, scoped, tag = 'scoped memory for dqn_forward.1']
    #allocation12 [shape = 'u8[512]{0}', space=vmem, size = 0x400, scoped, tag = 'input window, operand 8, single buffered']
    %14 = vsyncpa [#allocation3], 0
    %15 = vsyncpa [#allocation5], 0
    %16 = vsyncpa [#allocation8], 0
    %17 = vsyncpa [#allocation11], 0
    // Predicated region
    $region2: #{dqn_forward.1} parent=1 // pred_check
      _
    $region3: #{dqn_forward.1} parent=1 // pred_check_branch
      %19 = sbr.rel (0) target = $region5
    $region4: #{dqn_forward.1} parent=1 // pred_region
      _
    $region5: #{dqn_forward.1} parent=1 // pred_fallthru
      _
    // Predicated region
    $region6: #{dqn_forward.1} parent=1 // pred_check
      _
    $region7: #{dqn_forward.1} parent=1 // pred_check_branch
      %21 = sbr.rel (0) target = $region9
    $region8: #{dqn_forward.1} parent=1 // pred_region
      _
    $region9: #{dqn_forward.1} parent=1 // pred_fallthru
      _
    // Predicated region
    $region10: #{dqn_forward.1} parent=1 // pred_check
      _
    $region11: #{dqn_forward.1} parent=1 // pred_check_branch
      %23 = sbr.rel (0) target = $region13
    $region12: #{dqn_forward.1} parent=1 // pred_region
      %s25 = ssub.s32 64, 64
      %26 = vsyncadd [#allocation3], %s25
      %s28 = sshll.u32 [#allocation2], 4
      %s29 = int_to_ptr.vmem [resolvable:$true] %s28
      %31 = dma.hbm_to_vmem [thread:$0]  %s2, 64, %s29, [#allocation3]
    $region13: #{dqn_forward.1} parent=1 // pred_fallthru
      _
    // Predicated region
    $region14: #{dqn_forward.1} parent=1 // pred_check
      _
    $region15: #{dqn_forward.1} parent=1 // pred_check_branch
      %33 = sbr.rel (0) target = $region17
    $region16: #{dqn_forward.1} parent=1 // pred_region
      %s35 = ssub.s32 16384, 16384
      %36 = vsyncadd [#allocation5], %s35
      %s37 = sshll.u32 [#allocation4], 4
      %s38 = int_to_ptr.vmem [resolvable:$true] %s37
      %43 = dma.hbm_to_vmem [thread:$0]  %s3, 16384, %s38, [#allocation5], 256, 256, 16
    $region17: #{dqn_forward.1} parent=1 // pred_fallthru
      _
    // Predicated region
    $region18: #{dqn_forward.1} parent=1 // pred_check
      _
    $region19: #{dqn_forward.1} parent=1 // pred_check_branch
      %45 = sbr.rel (0) target = $region21
    $region20: #{dqn_forward.1} parent=1 // pred_region
      %s47 = ssub.s32 64, 64
      %48 = vsyncadd [#allocation5], %s47
      %s50 = sshll.u32 [#allocation6], 4
      %s51 = int_to_ptr.vmem [resolvable:$true] %s50
      %53 = dma.hbm_to_vmem [thread:$0]  %s4, 64, %s51, [#allocation5]
    $region21: #{dqn_forward.1} parent=1 // pred_fallthru
      _
    // Predicated region
    $region22: #{dqn_forward.1} parent=1 // pred_check
      _
    $region23: #{dqn_forward.1} parent=1 // pred_check_branch
      %55 = sbr.rel (0) target = $region25
    $region24: #{dqn_forward.1} parent=1 // pred_region
      %s57 = ssub.s32 16384, 16384
      %58 = vsyncadd [#allocation8], %s57
      %s59 = sshll.u32 [#allocation7], 4
      %s60 = int_to_ptr.vmem [resolvable:$true] %s59
      %65 = dma.hbm_to_vmem [thread:$0]  %s5, 16384, %s60, [#allocation8], 256, 256, 16
    $region25: #{dqn_forward.1} parent=1 // pred_fallthru
      _
    // Predicated region
    $region26: #{dqn_forward.1} parent=1 // pred_check
      _
    $region27: #{dqn_forward.1} parent=1 // pred_check_branch
      %67 = sbr.rel (0) target = $region29
    $region28: #{dqn_forward.1} parent=1 // pred_region
      %s69 = ssub.s32 64, 64
      %70 = vsyncadd [#allocation8], %s69
      %s72 = sshll.u32 [#allocation9], 4
      %s73 = int_to_ptr.vmem [resolvable:$true] %s72
      %75 = dma.hbm_to_vmem [thread:$0]  %s6, 64, %s73, [#allocation8]
    $region29: #{dqn_forward.1} parent=1 // pred_fallthru
      _
    // Predicated region
    $region30: #{dqn_forward.1} parent=1 // pred_check
      _
    $region31: #{dqn_forward.1} parent=1 // pred_check_branch
      %77 = sbr.rel (0) target = $region33
    $region32: #{dqn_forward.1} parent=1 // pred_region
      %s79 = ssub.s32 4096, 4096
      %80 = vsyncadd [#allocation11], %s79
      %s81 = sshll.u32 [#allocation10], 4
      %s82 = int_to_ptr.vmem [resolvable:$true] %s81
      %87 = dma.hbm_to_vmem [thread:$0]  %s7, 4096, %s82, [#allocation11], 64, 64, 4
    $region33: #{dqn_forward.1} parent=1 // pred_fallthru
      _
    // Predicated region
    $region34: #{dqn_forward.1} parent=1 // pred_check
      _
    $region35: #{dqn_forward.1} parent=1 // pred_check_branch
      %89 = sbr.rel (0) target = $region37
    $region36: #{dqn_forward.1} parent=1 // pred_region
      %s91 = ssub.s32 16, 16
      %92 = vsyncadd [#allocation11], %s91
      %s94 = sshll.u32 [#allocation12], 4
      %s95 = int_to_ptr.vmem [resolvable:$true] %s94
      %97 = dma.hbm_to_vmem [thread:$0]  %s8, 16, %s95, [#allocation11]
    $region37: #{dqn_forward.1} parent=1 // pred_fallthru
      _
    // Predicated region
    $region38: #{dqn_forward.1} parent=1 // pred_check
      _
    $region39: #{dqn_forward.1} parent=1 // pred_check_branch
      %99 = sbr.rel (0) target = $region41
    $region40: #{dqn_forward.1} parent=1 // pred_region
      %100 = dma.done [#allocation3], 64
    $region41: #{dqn_forward.1} parent=1 // pred_fallthru
      _
    // Predicated region
    $region42: #{dqn_forward.1} parent=1 // pred_check
      _
    $region43: #{dqn_forward.1} parent=1 // pred_check_branch
      %102 = sbr.rel (0) target = $region45
    $region44: #{dqn_forward.1} parent=1 // pred_region
      %103 = dma.done [#allocation5], 16384
    $region45: #{dqn_forward.1} parent=1 // pred_fallthru
      _
    // Predicated region
    $region46: #{dqn_forward.1} parent=1 // pred_check
      _
    $region47: #{dqn_forward.1} parent=1 // pred_check_branch
      %105 = sbr.rel (0) target = $region49
    $region48: #{dqn_forward.1} parent=1 // pred_region
      %106 = dma.done [#allocation5], 64
    $region49: #{dqn_forward.1} parent=1 // pred_fallthru
      _
    // Predicated region
    $region50: #{dqn_forward.1} parent=1 // pred_check
      _
    $region51: #{dqn_forward.1} parent=1 // pred_check_branch
      %108 = sbr.rel (0) target = $region53
    $region52: #{dqn_forward.1} parent=1 // pred_region
      %109 = dma.done [#allocation8], 16384
    $region53: #{dqn_forward.1} parent=1 // pred_fallthru
      _
    // Predicated region
    $region54: #{dqn_forward.1} parent=1 // pred_check
      _
    $region55: #{dqn_forward.1} parent=1 // pred_check_branch
      %111 = sbr.rel (0) target = $region57
    $region56: #{dqn_forward.1} parent=1 // pred_region
      %112 = dma.done [#allocation8], 64
    $region57: #{dqn_forward.1} parent=1 // pred_fallthru
      _
    // Predicated region
    $region58: #{dqn_forward.1} parent=1 // pred_check
      _
    $region59: #{dqn_forward.1} parent=1 // pred_check_branch
      %114 = sbr.rel (0) target = $region61
    $region60: #{dqn_forward.1} parent=1 // pred_region
      %115 = dma.done [#allocation11], 4096
    $region61: #{dqn_forward.1} parent=1 // pred_fallthru
      _
    // Predicated region
    $region62: #{dqn_forward.1} parent=1 // pred_check
      _
    $region63: #{dqn_forward.1} parent=1 // pred_check_branch
      %117 = sbr.rel (0) target = $region65
    $region64: #{dqn_forward.1} parent=1 // pred_region
      %118 = dma.done [#allocation11], 16
    $region65: #{dqn_forward.1} parent=1 // pred_fallthru
      _
    %v120 = vld [vmem:[%s0] sm:$0xf]
    %v121 = vld [vmem:[%s0 + $0x4] sm:$0xf]
    %v122 = vld [vmem:[%s1] sm:$0xff]
    %v123 = vld [vmem:[%s1 + $0x8] sm:$0xff]
    %v124 = vld [vmem:[%s1 + $0x10] sm:$0x33]
    %v125 = vld [vmem:[%s1 + $0x18] sm:$0x33]
    %v126 = vld [vmem:[#allocation2] sm:$0xf]
    %v128 = vlaneseq
    %v129 = vshrl.u32 %v128, 7
    %v130 = vsub.s32 0, %v129
    %v131 = vrot.slane %v126, %v130
    %v132 = vlaneseq
    %v133 = vshrl.u32 %v132, 7
    %v134 = vsub.s32 1, %v133
    %v135 = vrot.slane %v126, %v134
    %v136 = vlaneseq
    %v137 = vshrl.u32 %v136, 7
    %v138 = vsub.s32 2, %v137
    %v139 = vrot.slane %v126, %v138
    %v140 = vlaneseq
    %v141 = vshrl.u32 %v140, 7
    %v142 = vsub.s32 3, %v141
    %v143 = vrot.slane %v126, %v142
    %v150 = vunpack.c.l.b16 %v120
    %v151 = vunpack.c.l.b16 %v121
    %v152 = vpack.c.b16 %v151, %v150
    %v157 = vunpack.c.l.b16 %v122
    %v158 = vunpack.c.h.b16 %v122
    %v159 = vunpack.c.l.b16 %v123
    %v160 = vunpack.c.h.b16 %v123
    %v161 = vunpack.c.l.b16 %v124
    %v162 = vunpack.c.h.b16 %v124
    %v163 = vunpack.c.l.b16 %v125
    %v164 = vunpack.c.h.b16 %v125
    %v165 = vpack.c.b16 %v161, %v157
    %v166 = vpack.c.b16 %v162, %v158
    %v167 = vpack.c.b16 %v163, %v159
    %v168 = vpack.c.b16 %v164, %v160
    %vm169 = vcmask 97280
    %v171 = vsel %vm169, %v152, 0
    %vm173 = vcmask 1045504
    %v175 = vsel %vm173, %v165, 0
    %v178 = vsel %vm173, %v166, 0
    %v181 = vsel %vm173, %v167, 0
    %v184 = vsel %vm173, %v168, 0
    %186 = vmatprep.subr.bf16.mxu0 %v178
    %187 = vmatpush1.bf16.msra.mxu0 %v175
    %188 = vmatprep.subr.bf16.mxu0 0
    %189 = vmatpush1.bf16.msra.mxu0 0
    %190 = vmatprep.subr.bf16.mxu0 0
    %191 = vmatpush1.bf16.msra.mxu0 0
    %192 = vmatprep.subr.bf16.mxu0 0
    %193 = vmatpush1.bf16.msra.mxu0 0
    %194 = vmatprep.subr.bf16.mxu0 0
    %195 = vmatpush1.bf16.msra.mxu0 0
    %196 = vmatprep.subr.bf16.mxu0 0
    %197 = vmatpush1.bf16.msra.mxu0 0
    %198 = vmatprep.subr.bf16.mxu0 0
    %199 = vmatpush1.bf16.msra.mxu0 0
    %200 = vmatprep.subr.bf16.mxu0 0
    %201 = vmatpush1.bf16.msra.mxu0 0
    %202 = vmatprep.subr.bf16.mxu0 0
    %203 = vmatpush1.bf16.msra.mxu0 0
    %204 = vmatprep.subr.bf16.mxu0 0
    %205 = vmatpush1.bf16.msra.mxu0 0
    %206 = vmatprep.subr.bf16.mxu0 0
    %207 = vmatpush1.bf16.msra.mxu0 0
    %208 = vmatprep.subr.bf16.mxu0 0
    %209 = vmatpush1.bf16.msra.mxu0 0
    %210 = vmatprep.subr.bf16.mxu0 0
    %211 = vmatpush1.bf16.msra.mxu0 0
    %212 = vmatprep.subr.bf16.mxu0 0
    %213 = vmatpush1.bf16.msra.mxu0 0
    %214 = vmatprep.subr.bf16.mxu0 0
    %215 = vmatpush1.bf16.msra.mxu0 0
    %216 = vmatprep.subr.bf16.mxu0 0
    %217 = vmatpush1.bf16.msra.mxu0 0
    %218 = vmatprep.mubr.bf16.mxu0 0
    %219 = vmatmul.mubr.bf16.gmra.mrb[0].mxu0 %v171
    %v220 = vpop.f32.mrb[0].mxu0
    %v221 = vadd.f32 %v131, %v220
    %v222 = vpop.f32.mrb[0].mxu0
    %v223 = vadd.f32 %v135, %v222
    %v224 = vpop.f32.mrb[0].mxu0
    %v225 = vadd.f32 %v131, %v224
    %v226 = vpop.f32.mrb[0].mxu0
    %v227 = vadd.f32 %v135, %v226
    %228 = vdwg.mxu0
    %229 = vmatprep.subr.bf16.mxu0 %v184
    %230 = vmatpush1.bf16.msra.mxu0 %v181
    %231 = vmatprep.subr.bf16.mxu0 0
    %232 = vmatpush1.bf16.msra.mxu0 0
    %233 = vmatprep.subr.bf16.mxu0 0
    %234 = vmatpush1.bf16.msra.mxu0 0
    %235 = vmatprep.subr.bf16.mxu0 0
    %236 = vmatpush1.bf16.msra.mxu0 0
    %237 = vmatprep.subr.bf16.mxu0 0
    %238 = vmatpush1.bf16.msra.mxu0 0
    %239 = vmatprep.subr.bf16.mxu0 0
    %240 = vmatpush1.bf16.msra.mxu0 0
    %241 = vmatprep.subr.bf16.mxu0 0
    %242 = vmatpush1.bf16.msra.mxu0 0
    %243 = vmatprep.subr.bf16.mxu0 0
    %244 = vmatpush1.bf16.msra.mxu0 0
    %245 = vmatprep.subr.bf16.mxu0 0
    %246 = vmatpush1.bf16.msra.mxu0 0
    %247 = vmatprep.subr.bf16.mxu0 0
    %248 = vmatpush1.bf16.msra.mxu0 0
    %249 = vmatprep.subr.bf16.mxu0 0
    %250 = vmatpush1.bf16.msra.mxu0 0
    %251 = vmatprep.subr.bf16.mxu0 0
    %252 = vmatpush1.bf16.msra.mxu0 0
    %253 = vmatprep.subr.bf16.mxu0 0
    %254 = vmatpush1.bf16.msra.mxu0 0
    %255 = vmatprep.subr.bf16.mxu0 0
    %256 = vmatpush1.bf16.msra.mxu0 0
    %257 = vmatprep.subr.bf16.mxu0 0
    %258 = vmatpush1.bf16.msra.mxu0 0
    %259 = vmatprep.subr.bf16.mxu0 0
    %260 = vmatpush1.bf16.msra.mxu0 0
    %261 = vmatprep.mubr.bf16.mxu0 0
    %262 = vmatmul.mubr.bf16.gmra.mrb[0].mxu0 %v171
    %v263 = vpop.f32.mrb[0].mxu0
    %v264 = vadd.f32 %v139, %v263
    %v265 = vpop.f32.mrb[0].mxu0
    %v266 = vadd.f32 %v143, %v265
    %v267 = vpop.f32.mrb[0].mxu0
    %v268 = vadd.f32 %v139, %v267
    %v269 = vpop.f32.mrb[0].mxu0
    %v270 = vadd.f32 %v143, %v269
    %271 = vdwg.mxu0
    %vm272 = vcmp.ge.f32.partialorder %v221, 0.0
    %vm273 = vcmp.ge.f32.partialorder %v223, 0.0
    %vm274 = vcmp.ge.f32.partialorder %v264, 0.0
    %vm275 = vcmp.ge.f32.partialorder %v266, 0.0
    %vm276 = vcmp.ge.f32.partialorder %v225, 0.0
    %vm277 = vcmp.ge.f32.partialorder %v227, 0.0
    %vm278 = vcmp.ge.f32.partialorder %v268, 0.0
    %vm279 = vcmp.ge.f32.partialorder %v270, 0.0
    %v280 = vmul.f32 %v221, 0.01
    %v281 = vmul.f32 %v223, 0.01
    %v282 = vmul.f32 %v264, 0.01
    %v283 = vmul.f32 %v266, 0.01
    %v284 = vmul.f32 %v225, 0.01
    %v285 = vmul.f32 %v227, 0.01
    %v286 = vmul.f32 %v268, 0.01
    %v287 = vmul.f32 %v270, 0.01
    %v288 = vsel %vm272, %v221, %v280
    %v289 = vsel %vm273, %v223, %v281
    %v290 = vsel %vm274, %v264, %v282
    %v291 = vsel %vm275, %v266, %v283
    %v292 = vsel %vm276, %v225, %v284
    %v293 = vsel %vm277, %v227, %v285
    %v294 = vsel %vm278, %v268, %v286
    %v295 = vsel %vm279, %v270, %v287
    %v296 = vpack.c.bf16 %v292, %v288
    %v297 = vpack.c.bf16 %v293, %v289
    %v298 = vpack.c.bf16 %v294, %v290
    %v299 = vpack.c.bf16 %v295, %v291
    %v300 = vld [vmem:[#allocation4] sm:$0xff]
    %v301 = vld [vmem:[#allocation4 + $0x8] sm:$0xff]
    %v302 = vld [vmem:[#allocation4 + $0x10] sm:$0xff]
    %v303 = vld [vmem:[#allocation4 + $0x18] sm:$0xff]
    %v304 = vld [vmem:[#allocation4 + $0x20] sm:$0xff]
    %v305 = vld [vmem:[#allocation4 + $0x28] sm:$0xff]
    %v306 = vld [vmem:[#allocation4 + $0x30] sm:$0xff]
    %v307 = vld [vmem:[#allocation4 + $0x38] sm:$0xff]
    %v308 = vld [vmem:[#allocation4 + $0x40] sm:$0xff]
    %v309 = vld [vmem:[#allocation4 + $0x48] sm:$0xff]
    %v310 = vld [vmem:[#allocation4 + $0x50] sm:$0xff]
    %v311 = vld [vmem:[#allocation4 + $0x58] sm:$0xff]
    %v312 = vld [vmem:[#allocation4 + $0x60] sm:$0xff]
    %v313 = vld [vmem:[#allocation4 + $0x68] sm:$0xff]
    %v314 = vld [vmem:[#allocation4 + $0x70] sm:$0xff]
    %v315 = vld [vmem:[#allocation4 + $0x78] sm:$0xff]
    %v316 = vld [vmem:[#allocation4 + $0x80] sm:$0xff]
    %v317 = vld [vmem:[#allocation4 + $0x88] sm:$0xff]
    %v318 = vld [vmem:[#allocation4 + $0x90] sm:$0xff]
    %v319 = vld [vmem:[#allocation4 + $0x98] sm:$0xff]
    %v320 = vld [vmem:[#allocation4 + $0xa0] sm:$0xff]
    %v321 = vld [vmem:[#allocation4 + $0xa8] sm:$0xff]
    %v322 = vld [vmem:[#allocation4 + $0xb0] sm:$0xff]
    %v323 = vld [vmem:[#allocation4 + $0xb8] sm:$0xff]
    %v324 = vld [vmem:[#allocation4 + $0xc0] sm:$0xff]
    %v325 = vld [vmem:[#allocation4 + $0xc8] sm:$0xff]
    %v326 = vld [vmem:[#allocation4 + $0xd0] sm:$0xff]
    %v327 = vld [vmem:[#allocation4 + $0xd8] sm:$0xff]
    %v328 = vld [vmem:[#allocation4 + $0xe0] sm:$0xff]
    %v329 = vld [vmem:[#allocation4 + $0xe8] sm:$0xff]
    %v330 = vld [vmem:[#allocation4 + $0xf0] sm:$0xff]
    %v331 = vld [vmem:[#allocation4 + $0xf8] sm:$0xff]
    %v332 = vld [vmem:[#allocation4 + $0x100] sm:$0xff]
    %v333 = vld [vmem:[#allocation4 + $0x108] sm:$0xff]
    %v334 = vld [vmem:[#allocation4 + $0x110] sm:$0xff]
    %v335 = vld [vmem:[#allocation4 + $0x118] sm:$0xff]
    %v336 = vld [vmem:[#allocation4 + $0x120] sm:$0xff]
    %v337 = vld [vmem:[#allocation4 + $0x128] sm:$0xff]
    %v338 = vld [vmem:[#allocation4 + $0x130] sm:$0xff]
    %v339 = vld [vmem:[#allocation4 + $0x138] sm:$0xff]
    %v340 = vld [vmem:[#allocation4 + $0x140] sm:$0xff]
    %v341 = vld [vmem:[#allocation4 + $0x148] sm:$0xff]
    %v342 = vld [vmem:[#allocation4 + $0x150] sm:$0xff]
    %v343 = vld [vmem:[#allocation4 + $0x158] sm:$0xff]
    %v344 = vld [vmem:[#allocation4 + $0x160] sm:$0xff]
    %v345 = vld [vmem:[#allocation4 + $0x168] sm:$0xff]
    %v346 = vld [vmem:[#allocation4 + $0x170] sm:$0xff]
    %v347 = vld [vmem:[#allocation4 + $0x178] sm:$0xff]
    %v348 = vld [vmem:[#allocation4 + $0x180] sm:$0xff]
    %v349 = vld [vmem:[#allocation4 + $0x188] sm:$0xff]
    %v350 = vld [vmem:[#allocation4 + $0x190] sm:$0xff]
    %v351 = vld [vmem:[#allocation4 + $0x198] sm:$0xff]
    %v352 = vld [vmem:[#allocation4 + $0x1a0] sm:$0xff]
    %v353 = vld [vmem:[#allocation4 + $0x1a8] sm:$0xff]
    %v354 = vld [vmem:[#allocation4 + $0x1b0] sm:$0xff]
    %v355 = vld [vmem:[#allocation4 + $0x1b8] sm:$0xff]
    %v356 = vld [vmem:[#allocation4 + $0x1c0] sm:$0xff]
    %v357 = vld [vmem:[#allocation4 + $0x1c8] sm:$0xff]
    %v358 = vld [vmem:[#allocation4 + $0x1d0] sm:$0xff]
    %v359 = vld [vmem:[#allocation4 + $0x1d8] sm:$0xff]
    %v360 = vld [vmem:[#allocation4 + $0x1e0] sm:$0xff]
    %v361 = vld [vmem:[#allocation4 + $0x1e8] sm:$0xff]
    %v362 = vld [vmem:[#allocation4 + $0x1f0] sm:$0xff]
    %v363 = vld [vmem:[#allocation4 + $0x1f8] sm:$0xff]
    %v364 = vld [vmem:[#allocation4 + $0x200] sm:$0xff]
    %v365 = vld [vmem:[#allocation4 + $0x208] sm:$0xff]
    %v366 = vld [vmem:[#allocation4 + $0x210] sm:$0xff]
    %v367 = vld [vmem:[#allocation4 + $0x218] sm:$0xff]
    %v368 = vld [vmem:[#allocation4 + $0x220] sm:$0xff]
    %v369 = vld [vmem:[#allocation4 + $0x228] sm:$0xff]
    %v370 = vld [vmem:[#allocation4 + $0x230] sm:$0xff]
    %v371 = vld [vmem:[#allocation4 + $0x238] sm:$0xff]
    %v372 = vld [vmem:[#allocation4 + $0x240] sm:$0xff]
    %v373 = vld [vmem:[#allocation4 + $0x248] sm:$0xff]
    %v374 = vld [vmem:[#allocation4 + $0x250] sm:$0xff]
    %v375 = vld [vmem:[#allocation4 + $0x258] sm:$0xff]
    %v376 = vld [vmem:[#allocation4 + $0x260] sm:$0xff]
    %v377 = vld [vmem:[#allocation4 + $0x268] sm:$0xff]
    %v378 = vld [vmem:[#allocation4 + $0x270] sm:$0xff]
    %v379 = vld [vmem:[#allocation4 + $0x278] sm:$0xff]
    %v380 = vld [vmem:[#allocation4 + $0x280] sm:$0xff]
    %v381 = vld [vmem:[#allocation4 + $0x288] sm:$0xff]
    %v382 = vld [vmem:[#allocation4 + $0x290] sm:$0xff]
    %v383 = vld [vmem:[#allocation4 + $0x298] sm:$0xff]
    %v384 = vld [vmem:[#allocation4 + $0x2a0] sm:$0xff]
    %v385 = vld [vmem:[#allocation4 + $0x2a8] sm:$0xff]
    %v386 = vld [vmem:[#allocation4 + $0x2b0] sm:$0xff]
    %v387 = vld [vmem:[#allocation4 + $0x2b8] sm:$0xff]
    %v388 = vld [vmem:[#allocation4 + $0x2c0] sm:$0xff]
    %v389 = vld [vmem:[#allocation4 + $0x2c8] sm:$0xff]
    %v390 = vld [vmem:[#allocation4 + $0x2d0] sm:$0xff]
    %v391 = vld [vmem:[#allocation4 + $0x2d8] sm:$0xff]
    %v392 = vld [vmem:[#allocation4 + $0x2e0] sm:$0xff]
    %v393 = vld [vmem:[#allocation4 + $0x2e8] sm:$0xff]
    %v394 = vld [vmem:[#allocation4 + $0x2f0] sm:$0xff]
    %v395 = vld [vmem:[#allocation4 + $0x2f8] sm:$0xff]
    %v396 = vld [vmem:[#allocation4 + $0x300] sm:$0xff]
    %v397 = vld [vmem:[#allocation4 + $0x308] sm:$0xff]
    %v398 = vld [vmem:[#allocation4 + $0x310] sm:$0xff]
    %v399 = vld [vmem:[#allocation4 + $0x318] sm:$0xff]
    %v400 = vld [vmem:[#allocation4 + $0x320] sm:$0xff]
    %v401 = vld [vmem:[#allocation4 + $0x328] sm:$0xff]
    %v402 = vld [vmem:[#allocation4 + $0x330] sm:$0xff]
    %v403 = vld [vmem:[#allocation4 + $0x338] sm:$0xff]
    %v404 = vld [vmem:[#allocation4 + $0x340] sm:$0xff]
    %v405 = vld [vmem:[#allocation4 + $0x348] sm:$0xff]
    %v406 = vld [vmem:[#allocation4 + $0x350] sm:$0xff]
    %v407 = vld [vmem:[#allocation4 + $0x358] sm:$0xff]
    %v408 = vld [vmem:[#allocation4 + $0x360] sm:$0xff]
    %v409 = vld [vmem:[#allocation4 + $0x368] sm:$0xff]
    %v410 = vld [vmem:[#allocation4 + $0x370] sm:$0xff]
    %v411 = vld [vmem:[#allocation4 + $0x378] sm:$0xff]
    %v412 = vld [vmem:[#allocation4 + $0x380] sm:$0xff]
    %v413 = vld [vmem:[#allocation4 + $0x388] sm:$0xff]
    %v414 = vld [vmem:[#allocation4 + $0x390] sm:$0xff]
    %v415 = vld [vmem:[#allocation4 + $0x398] sm:$0xff]
    %v416 = vld [vmem:[#allocation4 + $0x3a0] sm:$0xff]
    %v417 = vld [vmem:[#allocation4 + $0x3a8] sm:$0xff]
    %v418 = vld [vmem:[#allocation4 + $0x3b0] sm:$0xff]
    %v419 = vld [vmem:[#allocation4 + $0x3b8] sm:$0xff]
    %v420 = vld [vmem:[#allocation4 + $0x3c0] sm:$0xff]
    %v421 = vld [vmem:[#allocation4 + $0x3c8] sm:$0xff]
    %v422 = vld [vmem:[#allocation4 + $0x3d0] sm:$0xff]
    %v423 = vld [vmem:[#allocation4 + $0x3d8] sm:$0xff]
    %v424 = vld [vmem:[#allocation4 + $0x3e0] sm:$0xff]
    %v425 = vld [vmem:[#allocation4 + $0x3e8] sm:$0xff]
    %v426 = vld [vmem:[#allocation4 + $0x3f0] sm:$0xff]
    %v427 = vld [vmem:[#allocation4 + $0x3f8] sm:$0xff]
    %v428 = vld [vmem:[#allocation6] sm:$0xf]
    %v430 = vlaneseq
    %v431 = vshrl.u32 %v430, 7
    %v432 = vsub.s32 0, %v431
    %v433 = vrot.slane %v428, %v432
    %v434 = vlaneseq
    %v435 = vshrl.u32 %v434, 7
    %v436 = vsub.s32 1, %v435
    %v437 = vrot.slane %v428, %v436
    %v438 = vlaneseq
    %v439 = vshrl.u32 %v438, 7
    %v440 = vsub.s32 2, %v439
    %v441 = vrot.slane %v428, %v440
    %v442 = vlaneseq
    %v443 = vshrl.u32 %v442, 7
    %v444 = vsub.s32 3, %v443
    %v445 = vrot.slane %v428, %v444
    %v578 = vunpack.c.l.b16 %v300
    %v579 = vunpack.c.h.b16 %v300
    %v580 = vunpack.c.l.b16 %v301
    %v581 = vunpack.c.h.b16 %v301
    %v582 = vunpack.c.l.b16 %v302
    %v583 = vunpack.c.h.b16 %v302
    %v584 = vunpack.c.l.b16 %v303
    %v585 = vunpack.c.h.b16 %v303
    %v586 = vunpack.c.l.b16 %v304
    %v587 = vunpack.c.h.b16 %v304
    %v588 = vunpack.c.l.b16 %v305
    %v589 = vunpack.c.h.b16 %v305
    %v590 = vunpack.c.l.b16 %v306
    %v591 = vunpack.c.h.b16 %v306
    %v592 = vunpack.c.l.b16 %v307
    %v593 = vunpack.c.h.b16 %v307
    %v594 = vunpack.c.l.b16 %v308
    %v595 = vunpack.c.h.b16 %v308
    %v596 = vunpack.c.l.b16 %v309
    %v597 = vunpack.c.h.b16 %v309
    %v598 = vunpack.c.l.b16 %v310
    %v599 = vunpack.c.h.b16 %v310
    %v600 = vunpack.c.l.b16 %v311
    %v601 = vunpack.c.h.b16 %v311
    %v602 = vunpack.c.l.b16 %v312
    %v603 = vunpack.c.h.b16 %v312
    %v604 = vunpack.c.l.b16 %v313
    %v605 = vunpack.c.h.b16 %v313
    %v606 = vunpack.c.l.b16 %v314
    %v607 = vunpack.c.h.b16 %v314
    %v608 = vunpack.c.l.b16 %v315
    %v609 = vunpack.c.h.b16 %v315
    %v610 = vunpack.c.l.b16 %v316
    %v611 = vunpack.c.h.b16 %v316
    %v612 = vunpack.c.l.b16 %v317
    %v613 = vunpack.c.h.b16 %v317
    %v614 = vunpack.c.l.b16 %v318
    %v615 = vunpack.c.h.b16 %v318
    %v616 = vunpack.c.l.b16 %v319
    %v617 = vunpack.c.h.b16 %v319
    %v618 = vunpack.c.l.b16 %v320
    %v619 = vunpack.c.h.b16 %v320
    %v620 = vunpack.c.l.b16 %v321
    %v621 = vunpack.c.h.b16 %v321
    %v622 = vunpack.c.l.b16 %v322
    %v623 = vunpack.c.h.b16 %v322
    %v624 = vunpack.c.l.b16 %v323
    %v625 = vunpack.c.h.b16 %v323
    %v626 = vunpack.c.l.b16 %v324
    %v627 = vunpack.c.h.b16 %v324
    %v628 = vunpack.c.l.b16 %v325
    %v629 = vunpack.c.h.b16 %v325
    %v630 = vunpack.c.l.b16 %v326
    %v631 = vunpack.c.h.b16 %v326
    %v632 = vunpack.c.l.b16 %v327
    %v633 = vunpack.c.h.b16 %v327
    %v634 = vunpack.c.l.b16 %v328
    %v635 = vunpack.c.h.b16 %v328
    %v636 = vunpack.c.l.b16 %v329
    %v637 = vunpack.c.h.b16 %v329
    %v638 = vunpack.c.l.b16 %v330
    %v639 = vunpack.c.h.b16 %v330
    %v640 = vunpack.c.l.b16 %v331
    %v641 = vunpack.c.h.b16 %v331
    %v642 = vunpack.c.l.b16 %v332
    %v643 = vunpack.c.h.b16 %v332
    %v644 = vunpack.c.l.b16 %v333
    %v645 = vunpack.c.h.b16 %v333
    %v646 = vunpack.c.l.b16 %v334
    %v647 = vunpack.c.h.b16 %v334
    %v648 = vunpack.c.l.b16 %v335
    %v649 = vunpack.c.h.b16 %v335
    %v650 = vunpack.c.l.b16 %v336
    %v651 = vunpack.c.h.b16 %v336
    %v652 = vunpack.c.l.b16 %v337
    %v653 = vunpack.c.h.b16 %v337
    %v654 = vunpack.c.l.b16 %v338
    %v655 = vunpack.c.h.b16 %v338
    %v656 = vunpack.c.l.b16 %v339
    %v657 = vunpack.c.h.b16 %v339
    %v658 = vunpack.c.l.b16 %v340
    %v659 = vunpack.c.h.b16 %v340
    %v660 = vunpack.c.l.b16 %v341
    %v661 = vunpack.c.h.b16 %v341
    %v662 = vunpack.c.l.b16 %v342
    %v663 = vunpack.c.h.b16 %v342
    %v664 = vunpack.c.l.b16 %v343
    %v665 = vunpack.c.h.b16 %v343
    %v666 = vunpack.c.l.b16 %v344
    %v667 = vunpack.c.h.b16 %v344
    %v668 = vunpack.c.l.b16 %v345
    %v669 = vunpack.c.h.b16 %v345
    %v670 = vunpack.c.l.b16 %v346
    %v671 = vunpack.c.h.b16 %v346
    %v672 = vunpack.c.l.b16 %v347
    %v673 = vunpack.c.h.b16 %v347
    %v674 = vunpack.c.l.b16 %v348
    %v675 = vunpack.c.h.b16 %v348
    %v676 = vunpack.c.l.b16 %v349
    %v677 = vunpack.c.h.b16 %v349
    %v678 = vunpack.c.l.b16 %v350
    %v679 = vunpack.c.h.b16 %v350
    %v680 = vunpack.c.l.b16 %v351
    %v681 = vunpack.c.h.b16 %v351
    %v682 = vunpack.c.l.b16 %v352
    %v683 = vunpack.c.h.b16 %v352
    %v684 = vunpack.c.l.b16 %v353
    %v685 = vunpack.c.h.b16 %v353
    %v686 = vunpack.c.l.b16 %v354
    %v687 = vunpack.c.h.b16 %v354
    %v688 = vunpack.c.l.b16 %v355
    %v689 = vunpack.c.h.b16 %v355
    %v690 = vunpack.c.l.b16 %v356
    %v691 = vunpack.c.h.b16 %v356
    %v692 = vunpack.c.l.b16 %v357
    %v693 = vunpack.c.h.b16 %v357
    %v694 = vunpack.c.l.b16 %v358
    %v695 = vunpack.c.h.b16 %v358
    %v696 = vunpack.c.l.b16 %v359
    %v697 = vunpack.c.h.b16 %v359
    %v698 = vunpack.c.l.b16 %v360
    %v699 = vunpack.c.h.b16 %v360
    %v700 = vunpack.c.l.b16 %v361
    %v701 = vunpack.c.h.b16 %v361
    %v702 = vunpack.c.l.b16 %v362
    %v703 = vunpack.c.h.b16 %v362
    %v704 = vunpack.c.l.b16 %v363
    %v705 = vunpack.c.h.b16 %v363
    %v706 = vunpack.c.l.b16 %v364
    %v707 = vunpack.c.h.b16 %v364
    %v708 = vunpack.c.l.b16 %v365
    %v709 = vunpack.c.h.b16 %v365
    %v710 = vunpack.c.l.b16 %v366
    %v711 = vunpack.c.h.b16 %v366
    %v712 = vunpack.c.l.b16 %v367
    %v713 = vunpack.c.h.b16 %v367
    %v714 = vunpack.c.l.b16 %v368
    %v715 = vunpack.c.h.b16 %v368
    %v716 = vunpack.c.l.b16 %v369
    %v717 = vunpack.c.h.b16 %v369
    %v718 = vunpack.c.l.b16 %v370
    %v719 = vunpack.c.h.b16 %v370
    %v720 = vunpack.c.l.b16 %v371
    %v721 = vunpack.c.h.b16 %v371
    %v722 = vunpack.c.l.b16 %v372
    %v723 = vunpack.c.h.b16 %v372
    %v724 = vunpack.c.l.b16 %v373
    %v725 = vunpack.c.h.b16 %v373
    %v726 = vunpack.c.l.b16 %v374
    %v727 = vunpack.c.h.b16 %v374
    %v728 = vunpack.c.l.b16 %v375
    %v729 = vunpack.c.h.b16 %v375
    %v730 = vunpack.c.l.b16 %v376
    %v731 = vunpack.c.h.b16 %v376
    %v732 = vunpack.c.l.b16 %v377
    %v733 = vunpack.c.h.b16 %v377
    %v734 = vunpack.c.l.b16 %v378
    %v735 = vunpack.c.h.b16 %v378
    %v736 = vunpack.c.l.b16 %v379
    %v737 = vunpack.c.h.b16 %v379
    %v738 = vunpack.c.l.b16 %v380
    %v739 = vunpack.c.h.b16 %v380
    %v740 = vunpack.c.l.b16 %v381
    %v741 = vunpack.c.h.b16 %v381
    %v742 = vunpack.c.l.b16 %v382
    %v743 = vunpack.c.h.b16 %v382
    %v744 = vunpack.c.l.b16 %v383
    %v745 = vunpack.c.h.b16 %v383
    %v746 = vunpack.c.l.b16 %v384
    %v747 = vunpack.c.h.b16 %v384
    %v748 = vunpack.c.l.b16 %v385
    %v749 = vunpack.c.h.b16 %v385
    %v750 = vunpack.c.l.b16 %v386
    %v751 = vunpack.c.h.b16 %v386
    %v752 = vunpack.c.l.b16 %v387
    %v753 = vunpack.c.h.b16 %v387
    %v754 = vunpack.c.l.b16 %v388
    %v755 = vunpack.c.h.b16 %v388
    %v756 = vunpack.c.l.b16 %v389
    %v757 = vunpack.c.h.b16 %v389
    %v758 = vunpack.c.l.b16 %v390
    %v759 = vunpack.c.h.b16 %v390
    %v760 = vunpack.c.l.b16 %v391
    %v761 = vunpack.c.h.b16 %v391
    %v762 = vunpack.c.l.b16 %v392
    %v763 = vunpack.c.h.b16 %v392
    %v764 = vunpack.c.l.b16 %v393
    %v765 = vunpack.c.h.b16 %v393
    %v766 = vunpack.c.l.b16 %v394
    %v767 = vunpack.c.h.b16 %v394
    %v768 = vunpack.c.l.b16 %v395
    %v769 = vunpack.c.h.b16 %v395
    %v770 = vunpack.c.l.b16 %v396
    %v771 = vunpack.c.h.b16 %v396
    %v772 = vunpack.c.l.b16 %v397
    %v773 = vunpack.c.h.b16 %v397
    %v774 = vunpack.c.l.b16 %v398
    %v775 = vunpack.c.h.b16 %v398
    %v776 = vunpack.c.l.b16 %v399
    %v777 = vunpack.c.h.b16 %v399
    %v778 = vunpack.c.l.b16 %v400
    %v779 = vunpack.c.h.b16 %v400
    %v780 = vunpack.c.l.b16 %v401
    %v781 = vunpack.c.h.b16 %v401
    %v782 = vunpack.c.l.b16 %v402
    %v783 = vunpack.c.h.b16 %v402
    %v784 = vunpack.c.l.b16 %v403
    %v785 = vunpack.c.h.b16 %v403
    %v786 = vunpack.c.l.b16 %v404
    %v787 = vunpack.c.h.b16 %v404
    %v788 = vunpack.c.l.b16 %v405
    %v789 = vunpack.c.h.b16 %v405
    %v790 = vunpack.c.l.b16 %v406
    %v791 = vunpack.c.h.b16 %v406
    %v792 = vunpack.c.l.b16 %v407
    %v793 = vunpack.c.h.b16 %v407
    %v794 = vunpack.c.l.b16 %v408
    %v795 = vunpack.c.h.b16 %v408
    %v796 = vunpack.c.l.b16 %v409
    %v797 = vunpack.c.h.b16 %v409
    %v798 = vunpack.c.l.b16 %v410
    %v799 = vunpack.c.h.b16 %v410
    %v800 = vunpack.c.l.b16 %v411
    %v801 = vunpack.c.h.b16 %v411
    %v802 = vunpack.c.l.b16 %v412
    %v803 = vunpack.c.h.b16 %v412
    %v804 = vunpack.c.l.b16 %v413
    %v805 = vunpack.c.h.b16 %v413
    %v806 = vunpack.c.l.b16 %v414
    %v807 = vunpack.c.h.b16 %v414
    %v808 = vunpack.c.l.b16 %v415
    %v809 = vunpack.c.h.b16 %v415
    %v810 = vunpack.c.l.b16 %v416
    %v811 = vunpack.c.h.b16 %v416
    %v812 = vunpack.c.l.b16 %v417
    %v813 = vunpack.c.h.b16 %v417
    %v814 = vunpack.c.l.b16 %v418
    %v815 = vunpack.c.h.b16 %v418
    %v816 = vunpack.c.l.b16 %v419
    %v817 = vunpack.c.h.b16 %v419
    %v818 = vunpack.c.l.b16 %v420
    %v819 = vunpack.c.h.b16 %v420
    %v820 = vunpack.c.l.b16 %v421
    %v821 = vunpack.c.h.b16 %v421
    %v822 = vunpack.c.l.b16 %v422
    %v823 = vunpack.c.h.b16 %v422
    %v824 = vunpack.c.l.b16 %v423
    %v825 = vunpack.c.h.b16 %v423
    %v826 = vunpack.c.l.b16 %v424
    %v827 = vunpack.c.h.b16 %v424
    %v828 = vunpack.c.l.b16 %v425
    %v829 = vunpack.c.h.b16 %v425
    %v830 = vunpack.c.l.b16 %v426
    %v831 = vunpack.c.h.b16 %v426
    %v832 = vunpack.c.l.b16 %v427
    %v833 = vunpack.c.h.b16 %v427
    %v834 = vpack.c.b16 %v582, %v578
    %v835 = vpack.c.b16 %v583, %v579
    %v836 = vpack.c.b16 %v584, %v580
    %v837 = vpack.c.b16 %v585, %v581
    %v838 = vpack.c.b16 %v590, %v586
    %v839 = vpack.c.b16 %v591, %v587
    %v840 = vpack.c.b16 %v592, %v588
    %v841 = vpack.c.b16 %v593, %v589
    %v842 = vpack.c.b16 %v598, %v594
    %v843 = vpack.c.b16 %v599, %v595
    %v844 = vpack.c.b16 %v600, %v596
    %v845 = vpack.c.b16 %v601, %v597
    %v846 = vpack.c.b16 %v606, %v602
    %v847 = vpack.c.b16 %v607, %v603
    %v848 = vpack.c.b16 %v608, %v604
    %v849 = vpack.c.b16 %v609, %v605
    %v850 = vpack.c.b16 %v614, %v610
    %v851 = vpack.c.b16 %v615, %v611
    %v852 = vpack.c.b16 %v616, %v612
    %v853 = vpack.c.b16 %v617, %v613
    %v854 = vpack.c.b16 %v622, %v618
    %v855 = vpack.c.b16 %v623, %v619
    %v856 = vpack.c.b16 %v624, %v620
    %v857 = vpack.c.b16 %v625, %v621
    %v858 = vpack.c.b16 %v630, %v626
    %v859 = vpack.c.b16 %v631, %v627
    %v860 = vpack.c.b16 %v632, %v628
    %v861 = vpack.c.b16 %v633, %v629
    %v862 = vpack.c.b16 %v638, %v634
    %v863 = vpack.c.b16 %v639, %v635
    %v864 = vpack.c.b16 %v640, %v636
    %v865 = vpack.c.b16 %v641, %v637
    %v866 = vpack.c.b16 %v646, %v642
    %v867 = vpack.c.b16 %v647, %v643
    %v868 = vpack.c.b16 %v648, %v644
    %v869 = vpack.c.b16 %v649, %v645
    %v870 = vpack.c.b16 %v654, %v650
    %v871 = vpack.c.b16 %v655, %v651
    %v872 = vpack.c.b16 %v656, %v652
    %v873 = vpack.c.b16 %v657, %v653
    %v874 = vpack.c.b16 %v662, %v658
    %v875 = vpack.c.b16 %v663, %v659
    %v876 = vpack.c.b16 %v664, %v660
    %v877 = vpack.c.b16 %v665, %v661
    %v878 = vpack.c.b16 %v670, %v666
    %v879 = vpack.c.b16 %v671, %v667
    %v880 = vpack.c.b16 %v672, %v668
    %v881 = vpack.c.b16 %v673, %v669
    %v882 = vpack.c.b16 %v678, %v674
    %v883 = vpack.c.b16 %v679, %v675
    %v884 = vpack.c.b16 %v680, %v676
    %v885 = vpack.c.b16 %v681, %v677
    %v886 = vpack.c.b16 %v686, %v682
    %v887 = vpack.c.b16 %v687, %v683
    %v888 = vpack.c.b16 %v688, %v684
    %v889 = vpack.c.b16 %v689, %v685
    %v890 = vpack.c.b16 %v694, %v690
    %v891 = vpack.c.b16 %v695, %v691
    %v892 = vpack.c.b16 %v696, %v692
    %v893 = vpack.c.b16 %v697, %v693
    %v894 = vpack.c.b16 %v702, %v698
    %v895 = vpack.c.b16 %v703, %v699
    %v896 = vpack.c.b16 %v704, %v700
    %v897 = vpack.c.b16 %v705, %v701
    %v898 = vpack.c.b16 %v710, %v706
    %v899 = vpack.c.b16 %v711, %v707
    %v900 = vpack.c.b16 %v712, %v708
    %v901 = vpack.c.b16 %v713, %v709
    %v902 = vpack.c.b16 %v718, %v714
    %v903 = vpack.c.b16 %v719, %v715
    %v904 = vpack.c.b16 %v720, %v716
    %v905 = vpack.c.b16 %v721, %v717
    %v906 = vpack.c.b16 %v726, %v722
    %v907 = vpack.c.b16 %v727, %v723
    %v908 = vpack.c.b16 %v728, %v724
    %v909 = vpack.c.b16 %v729, %v725
    %v910 = vpack.c.b16 %v734, %v730
    %v911 = vpack.c.b16 %v735, %v731
    %v912 = vpack.c.b16 %v736, %v732
    %v913 = vpack.c.b16 %v737, %v733
    %v914 = vpack.c.b16 %v742, %v738
    %v915 = vpack.c.b16 %v743, %v739
    %v916 = vpack.c.b16 %v744, %v740
    %v917 = vpack.c.b16 %v745, %v741
    %v918 = vpack.c.b16 %v750, %v746
    %v919 = vpack.c.b16 %v751, %v747
    %v920 = vpack.c.b16 %v752, %v748
    %v921 = vpack.c.b16 %v753, %v749
    %v922 = vpack.c.b16 %v758, %v754
    %v923 = vpack.c.b16 %v759, %v755
    %v924 = vpack.c.b16 %v760, %v756
    %v925 = vpack.c.b16 %v761, %v757
    %v926 = vpack.c.b16 %v766, %v762
    %v927 = vpack.c.b16 %v767, %v763
    %v928 = vpack.c.b16 %v768, %v764
    %v929 = vpack.c.b16 %v769, %v765
    %v930 = vpack.c.b16 %v774, %v770
    %v931 = vpack.c.b16 %v775, %v771
    %v932 = vpack.c.b16 %v776, %v772
    %v933 = vpack.c.b16 %v777, %v773
    %v934 = vpack.c.b16 %v782, %v778
    %v935 = vpack.c.b16 %v783, %v779
    %v936 = vpack.c.b16 %v784, %v780
    %v937 = vpack.c.b16 %v785, %v781
    %v938 = vpack.c.b16 %v790, %v786
    %v939 = vpack.c.b16 %v791, %v787
    %v940 = vpack.c.b16 %v792, %v788
    %v941 = vpack.c.b16 %v793, %v789
    %v942 = vpack.c.b16 %v798, %v794
    %v943 = vpack.c.b16 %v799, %v795
    %v944 = vpack.c.b16 %v800, %v796
    %v945 = vpack.c.b16 %v801, %v797
    %v946 = vpack.c.b16 %v806, %v802
    %v947 = vpack.c.b16 %v807, %v803
    %v948 = vpack.c.b16 %v808, %v804
    %v949 = vpack.c.b16 %v809, %v805
    %v950 = vpack.c.b16 %v814, %v810
    %v951 = vpack.c.b16 %v815, %v811
    %v952 = vpack.c.b16 %v816, %v812
    %v953 = vpack.c.b16 %v817, %v813
    %v954 = vpack.c.b16 %v822, %v818
    %v955 = vpack.c.b16 %v823, %v819
    %v956 = vpack.c.b16 %v824, %v820
    %v957 = vpack.c.b16 %v825, %v821
    %v958 = vpack.c.b16 %v830, %v826
    %v959 = vpack.c.b16 %v831, %v827
    %v960 = vpack.c.b16 %v832, %v828
    %v961 = vpack.c.b16 %v833, %v829
    %1090 = vmatprep.subr.bf16.mxu0 %v835
    %1091 = vmatpush1.bf16.msra.mxu0 %v834
    %1092 = vmatprep.subr.bf16.mxu0 %v839
    %1093 = vmatpush1.bf16.msra.mxu0 %v838
    %1094 = vmatprep.subr.bf16.mxu0 %v843
    %1095 = vmatpush1.bf16.msra.mxu0 %v842
    %1096 = vmatprep.subr.bf16.mxu0 %v847
    %1097 = vmatpush1.bf16.msra.mxu0 %v846
    %1098 = vmatprep.subr.bf16.mxu0 %v851
    %1099 = vmatpush1.bf16.msra.mxu0 %v850
    %1100 = vmatprep.subr.bf16.mxu0 %v855
    %1101 = vmatpush1.bf16.msra.mxu0 %v854
    %1102 = vmatprep.subr.bf16.mxu0 %v859
    %1103 = vmatpush1.bf16.msra.mxu0 %v858
    %1104 = vmatprep.subr.bf16.mxu0 %v863
    %1105 = vmatpush1.bf16.msra.mxu0 %v862
    %1106 = vmatprep.subr.bf16.mxu0 %v867
    %1107 = vmatpush1.bf16.msra.mxu0 %v866
    %1108 = vmatprep.subr.bf16.mxu0 %v871
    %1109 = vmatpush1.bf16.msra.mxu0 %v870
    %1110 = vmatprep.subr.bf16.mxu0 %v875
    %1111 = vmatpush1.bf16.msra.mxu0 %v874
    %1112 = vmatprep.subr.bf16.mxu0 %v879
    %1113 = vmatpush1.bf16.msra.mxu0 %v878
    %1114 = vmatprep.subr.bf16.mxu0 %v883
    %1115 = vmatpush1.bf16.msra.mxu0 %v882
    %1116 = vmatprep.subr.bf16.mxu0 %v887
    %1117 = vmatpush1.bf16.msra.mxu0 %v886
    %1118 = vmatprep.subr.bf16.mxu0 %v891
    %1119 = vmatpush1.bf16.msra.mxu0 %v890
    %1120 = vmatprep.subr.bf16.mxu0 %v895
    %1121 = vmatpush1.bf16.msra.mxu0 %v894
    %1122 = vmatprep.mubr.bf16.mxu0 %v297
    %1123 = vmatmul.mubr.bf16.gmra.mrb[0].mxu0 %v296
    %v1124 = vpop.f32.mrb[0].mxu0
    %v1125 = vadd.f32 %v433, %v1124
    %v1126 = vpop.f32.mrb[0].mxu0
    %v1127 = vadd.f32 %v437, %v1126
    %v1128 = vpop.f32.mrb[0].mxu0
    %v1129 = vadd.f32 %v433, %v1128
    %v1130 = vpop.f32.mrb[0].mxu0
    %v1131 = vadd.f32 %v437, %v1130
    %1132 = vdwg.mxu0
    %1133 = vmatprep.subr.bf16.mxu0 %v899
    %1134 = vmatpush1.bf16.msra.mxu0 %v898
    %1135 = vmatprep.subr.bf16.mxu0 %v903
    %1136 = vmatpush1.bf16.msra.mxu0 %v902
    %1137 = vmatprep.subr.bf16.mxu0 %v907
    %1138 = vmatpush1.bf16.msra.mxu0 %v906
    %1139 = vmatprep.subr.bf16.mxu0 %v911
    %1140 = vmatpush1.bf16.msra.mxu0 %v910
    %1141 = vmatprep.subr.bf16.mxu0 %v915
    %1142 = vmatpush1.bf16.msra.mxu0 %v914
    %1143 = vmatprep.subr.bf16.mxu0 %v919
    %1144 = vmatpush1.bf16.msra.mxu0 %v918
    %1145 = vmatprep.subr.bf16.mxu0 %v923
    %1146 = vmatpush1.bf16.msra.mxu0 %v922
    %1147 = vmatprep.subr.bf16.mxu0 %v927
    %1148 = vmatpush1.bf16.msra.mxu0 %v926
    %1149 = vmatprep.subr.bf16.mxu0 %v931
    %1150 = vmatpush1.bf16.msra.mxu0 %v930
    %1151 = vmatprep.subr.bf16.mxu0 %v935
    %1152 = vmatpush1.bf16.msra.mxu0 %v934
    %1153 = vmatprep.subr.bf16.mxu0 %v939
    %1154 = vmatpush1.bf16.msra.mxu0 %v938
    %1155 = vmatprep.subr.bf16.mxu0 %v943
    %1156 = vmatpush1.bf16.msra.mxu0 %v942
    %1157 = vmatprep.subr.bf16.mxu0 %v947
    %1158 = vmatpush1.bf16.msra.mxu0 %v946
    %1159 = vmatprep.subr.bf16.mxu0 %v951
    %1160 = vmatpush1.bf16.msra.mxu0 %v950
    %1161 = vmatprep.subr.bf16.mxu0 %v955
    %1162 = vmatpush1.bf16.msra.mxu0 %v954
    %1163 = vmatprep.subr.bf16.mxu0 %v959
    %1164 = vmatpush1.bf16.msra.mxu0 %v958
    %1165 = vmatprep.mubr.bf16.mxu0 %v299
    %1166 = vmatmul.mubr.bf16.gmra.mrb[0].mxu0 %v298
    %v1167 = vpop.f32.mrb[0].mxu0
    %v1168 = vadd.f32 %v1125, %v1167
    %v1169 = vpop.f32.mrb[0].mxu0
    %v1170 = vadd.f32 %v1127, %v1169
    %v1171 = vpop.f32.mrb[0].mxu0
    %v1172 = vadd.f32 %v1129, %v1171
    %v1173 = vpop.f32.mrb[0].mxu0
    %v1174 = vadd.f32 %v1131, %v1173
    %1175 = vdwg.mxu0
    %1176 = vmatprep.subr.bf16.mxu0 %v837
    %1177 = vmatpush1.bf16.msra.mxu0 %v836
    %1178 = vmatprep.subr.bf16.mxu0 %v841
    %1179 = vmatpush1.bf16.msra.mxu0 %v840
    %1180 = vmatprep.subr.bf16.mxu0 %v845
    %1181 = vmatpush1.bf16.msra.mxu0 %v844
    %1182 = vmatprep.subr.bf16.mxu0 %v849
    %1183 = vmatpush1.bf16.msra.mxu0 %v848
    %1184 = vmatprep.subr.bf16.mxu0 %v853
    %1185 = vmatpush1.bf16.msra.mxu0 %v852
    %1186 = vmatprep.subr.bf16.mxu0 %v857
    %1187 = vmatpush1.bf16.msra.mxu0 %v856
    %1188 = vmatprep.subr.bf16.mxu0 %v861
    %1189 = vmatpush1.bf16.msra.mxu0 %v860
    %1190 = vmatprep.subr.bf16.mxu0 %v865
    %1191 = vmatpush1.bf16.msra.mxu0 %v864
    %1192 = vmatprep.subr.bf16.mxu0 %v869
    %1193 = vmatpush1.bf16.msra.mxu0 %v868
    %1194 = vmatprep.subr.bf16.mxu0 %v873
    %1195 = vmatpush1.bf16.msra.mxu0 %v872
    %1196 = vmatprep.subr.bf16.mxu0 %v877
    %1197 = vmatpush1.bf16.msra.mxu0 %v876
    %1198 = vmatprep.subr.bf16.mxu0 %v881
    %1199 = vmatpush1.bf16.msra.mxu0 %v880
    %1200 = vmatprep.subr.bf16.mxu0 %v885
    %1201 = vmatpush1.bf16.msra.mxu0 %v884
    %1202 = vmatprep.subr.bf16.mxu0 %v889
    %1203 = vmatpush1.bf16.msra.mxu0 %v888
    %1204 = vmatprep.subr.bf16.mxu0 %v893
    %1205 = vmatpush1.bf16.msra.mxu0 %v892
    %1206 = vmatprep.subr.bf16.mxu0 %v897
    %1207 = vmatpush1.bf16.msra.mxu0 %v896
    %1208 = vmatprep.mubr.bf16.mxu0 %v297
    %1209 = vmatmul.mubr.bf16.gmra.mrb[0].mxu0 %v296
    %v1210 = vpop.f32.mrb[0].mxu0
    %v1211 = vadd.f32 %v441, %v1210
    %v1212 = vpop.f32.mrb[0].mxu0
    %v1213 = vadd.f32 %v445, %v1212
    %v1214 = vpop.f32.mrb[0].mxu0
    %v1215 = vadd.f32 %v441, %v1214
    %v1216 = vpop.f32.mrb[0].mxu0
    %v1217 = vadd.f32 %v445, %v1216
    %1218 = vdwg.mxu0
    %1219 = vmatprep.subr.bf16.mxu0 %v901
    %1220 = vmatpush1.bf16.msra.mxu0 %v900
    %1221 = vmatprep.subr.bf16.mxu0 %v905
    %1222 = vmatpush1.bf16.msra.mxu0 %v904
    %1223 = vmatprep.subr.bf16.mxu0 %v909
    %1224 = vmatpush1.bf16.msra.mxu0 %v908
    %1225 = vmatprep.subr.bf16.mxu0 %v913
    %1226 = vmatpush1.bf16.msra.mxu0 %v912
    %1227 = vmatprep.subr.bf16.mxu0 %v917
    %1228 = vmatpush1.bf16.msra.mxu0 %v916
    %1229 = vmatprep.subr.bf16.mxu0 %v921
    %1230 = vmatpush1.bf16.msra.mxu0 %v920
    %1231 = vmatprep.subr.bf16.mxu0 %v925
    %1232 = vmatpush1.bf16.msra.mxu0 %v924
    %1233 = vmatprep.subr.bf16.mxu0 %v929
    %1234 = vmatpush1.bf16.msra.mxu0 %v928
    %1235 = vmatprep.subr.bf16.mxu0 %v933
    %1236 = vmatpush1.bf16.msra.mxu0 %v932
    %1237 = vmatprep.subr.bf16.mxu0 %v937
    %1238 = vmatpush1.bf16.msra.mxu0 %v936
    %1239 = vmatprep.subr.bf16.mxu0 %v941
    %1240 = vmatpush1.bf16.msra.mxu0 %v940
    %1241 = vmatprep.subr.bf16.mxu0 %v945
    %1242 = vmatpush1.bf16.msra.mxu0 %v944
    %1243 = vmatprep.subr.bf16.mxu0 %v949
    %1244 = vmatpush1.bf16.msra.mxu0 %v948
    %1245 = vmatprep.subr.bf16.mxu0 %v953
    %1246 = vmatpush1.bf16.msra.mxu0 %v952
    %1247 = vmatprep.subr.bf16.mxu0 %v957
    %1248 = vmatpush1.bf16.msra.mxu0 %v956
    %1249 = vmatprep.subr.bf16.mxu0 %v961
    %1250 = vmatpush1.bf16.msra.mxu0 %v960
    %1251 = vmatprep.mubr.bf16.mxu0 %v299
    %1252 = vmatmul.mubr.bf16.gmra.mrb[0].mxu0 %v298
    %v1253 = vpop.f32.mrb[0].mxu0
    %v1254 = vadd.f32 %v1211, %v1253
    %v1255 = vpop.f32.mrb[0].mxu0
    %v1256 = vadd.f32 %v1213, %v1255
    %v1257 = vpop.f32.mrb[0].mxu0
    %v1258 = vadd.f32 %v1215, %v1257
    %v1259 = vpop.f32.mrb[0].mxu0
    %v1260 = vadd.f32 %v1217, %v1259
    %1261 = vdwg.mxu0
    %vm1262 = vcmp.ge.f32.partialorder %v1168, 0.0
    %vm1263 = vcmp.ge.f32.partialorder %v1170, 0.0
    %vm1264 = vcmp.ge.f32.partialorder %v1254, 0.0
    %vm1265 = vcmp.ge.f32.partialorder %v1256, 0.0
    %vm1266 = vcmp.ge.f32.partialorder %v1172, 0.0
    %vm1267 = vcmp.ge.f32.partialorder %v1174, 0.0
    %vm1268 = vcmp.ge.f32.partialorder %v1258, 0.0
    %vm1269 = vcmp.ge.f32.partialorder %v1260, 0.0
    %v1270 = vmul.f32 %v1168, 0.01
    %v1271 = vmul.f32 %v1170, 0.01
    %v1272 = vmul.f32 %v1254, 0.01
    %v1273 = vmul.f32 %v1256, 0.01
    %v1274 = vmul.f32 %v1172, 0.01
    %v1275 = vmul.f32 %v1174, 0.01
    %v1276 = vmul.f32 %v1258, 0.01
    %v1277 = vmul.f32 %v1260, 0.01
    %v1278 = vsel %vm1262, %v1168, %v1270
    %v1279 = vsel %vm1263, %v1170, %v1271
    %v1280 = vsel %vm1264, %v1254, %v1272
    %v1281 = vsel %vm1265, %v1256, %v1273
    %v1282 = vsel %vm1266, %v1172, %v1274
    %v1283 = vsel %vm1267, %v1174, %v1275
    %v1284 = vsel %vm1268, %v1258, %v1276
    %v1285 = vsel %vm1269, %v1260, %v1277
    %v1286 = vpack.c.bf16 %v1282, %v1278
    %v1287 = vpack.c.bf16 %v1283, %v1279
    %v1288 = vpack.c.bf16 %v1284, %v1280
    %v1289 = vpack.c.bf16 %v1285, %v1281
    %v1290 = vld [vmem:[#allocation7] sm:$0xff]
    %v1291 = vld [vmem:[#allocation7 + $0x8] sm:$0xff]
    %v1292 = vld [vmem:[#allocation7 + $0x10] sm:$0xff]
    %v1293 = vld [vmem:[#allocation7 + $0x18] sm:$0xff]
    %v1294 = vld [vmem:[#allocation7 + $0x20] sm:$0xff]
    %v1295 = vld [vmem:[#allocation7 + $0x28] sm:$0xff]
    %v1296 = vld [vmem:[#allocation7 + $0x30] sm:$0xff]
    %v1297 = vld [vmem:[#allocation7 + $0x38] sm:$0xff]
    %v1298 = vld [vmem:[#allocation7 + $0x40] sm:$0xff]
    %v1299 = vld [vmem:[#allocation7 + $0x48] sm:$0xff]
    %v1300 = vld [vmem:[#allocation7 + $0x50] sm:$0xff]
    %v1301 = vld [vmem:[#allocation7 + $0x58] sm:$0xff]
    %v1302 = vld [vmem:[#allocation7 + $0x60] sm:$0xff]
    %v1303 = vld [vmem:[#allocation7 + $0x68] sm:$0xff]
    %v1304 = vld [vmem:[#allocation7 + $0x70] sm:$0xff]
    %v1305 = vld [vmem:[#allocation7 + $0x78] sm:$0xff]
    %v1306 = vld [vmem:[#allocation7 + $0x80] sm:$0xff]
    %v1307 = vld [vmem:[#allocation7 + $0x88] sm:$0xff]
    %v1308 = vld [vmem:[#allocation7 + $0x90] sm:$0xff]
    %v1309 = vld [vmem:[#allocation7 + $0x98] sm:$0xff]
    %v1310 = vld [vmem:[#allocation7 + $0xa0] sm:$0xff]
    %v1311 = vld [vmem:[#allocation7 + $0xa8] sm:$0xff]
    %v1312 = vld [vmem:[#allocation7 + $0xb0] sm:$0xff]
    %v1313 = vld [vmem:[#allocation7 + $0xb8] sm:$0xff]
    %v1314 = vld [vmem:[#allocation7 + $0xc0] sm:$0xff]
    %v1315 = vld [vmem:[#allocation7 + $0xc8] sm:$0xff]
    %v1316 = vld [vmem:[#allocation7 + $0xd0] sm:$0xff]
    %v1317 = vld [vmem:[#allocation7 + $0xd8] sm:$0xff]
    %v1318 = vld [vmem:[#allocation7 + $0xe0] sm:$0xff]
    %v1319 = vld [vmem:[#allocation7 + $0xe8] sm:$0xff]
    %v1320 = vld [vmem:[#allocation7 + $0xf0] sm:$0xff]
    %v1321 = vld [vmem:[#allocation7 + $0xf8] sm:$0xff]
    %v1322 = vld [vmem:[#allocation7 + $0x100] sm:$0xff]
    %v1323 = vld [vmem:[#allocation7 + $0x108] sm:$0xff]
    %v1324 = vld [vmem:[#allocation7 + $0x110] sm:$0xff]
    %v1325 = vld [vmem:[#allocation7 + $0x118] sm:$0xff]
    %v1326 = vld [vmem:[#allocation7 + $0x120] sm:$0xff]
    %v1327 = vld [vmem:[#allocation7 + $0x128] sm:$0xff]
    %v1328 = vld [vmem:[#allocation7 + $0x130] sm:$0xff]
    %v1329 = vld [vmem:[#allocation7 + $0x138] sm:$0xff]
    %v1330 = vld [vmem:[#allocation7 + $0x140] sm:$0xff]
    %v1331 = vld [vmem:[#allocation7 + $0x148] sm:$0xff]
    %v1332 = vld [vmem:[#allocation7 + $0x150] sm:$0xff]
    %v1333 = vld [vmem:[#allocation7 + $0x158] sm:$0xff]
    %v1334 = vld [vmem:[#allocation7 + $0x160] sm:$0xff]
    %v1335 = vld [vmem:[#allocation7 + $0x168] sm:$0xff]
    %v1336 = vld [vmem:[#allocation7 + $0x170] sm:$0xff]
    %v1337 = vld [vmem:[#allocation7 + $0x178] sm:$0xff]
    %v1338 = vld [vmem:[#allocation7 + $0x180] sm:$0xff]
    %v1339 = vld [vmem:[#allocation7 + $0x188] sm:$0xff]
    %v1340 = vld [vmem:[#allocation7 + $0x190] sm:$0xff]
    %v1341 = vld [vmem:[#allocation7 + $0x198] sm:$0xff]
    %v1342 = vld [vmem:[#allocation7 + $0x1a0] sm:$0xff]
    %v1343 = vld [vmem:[#allocation7 + $0x1a8] sm:$0xff]
    %v1344 = vld [vmem:[#allocation7 + $0x1b0] sm:$0xff]
    %v1345 = vld [vmem:[#allocation7 + $0x1b8] sm:$0xff]
    %v1346 = vld [vmem:[#allocation7 + $0x1c0] sm:$0xff]
    %v1347 = vld [vmem:[#allocation7 + $0x1c8] sm:$0xff]
    %v1348 = vld [vmem:[#allocation7 + $0x1d0] sm:$0xff]
    %v1349 = vld [vmem:[#allocation7 + $0x1d8] sm:$0xff]
    %v1350 = vld [vmem:[#allocation7 + $0x1e0] sm:$0xff]
    %v1351 = vld [vmem:[#allocation7 + $0x1e8] sm:$0xff]
    %v1352 = vld [vmem:[#allocation7 + $0x1f0] sm:$0xff]
    %v1353 = vld [vmem:[#allocation7 + $0x1f8] sm:$0xff]
    %v1354 = vld [vmem:[#allocation7 + $0x200] sm:$0xff]
    %v1355 = vld [vmem:[#allocation7 + $0x208] sm:$0xff]
    %v1356 = vld [vmem:[#allocation7 + $0x210] sm:$0xff]
    %v1357 = vld [vmem:[#allocation7 + $0x218] sm:$0xff]
    %v1358 = vld [vmem:[#allocation7 + $0x220] sm:$0xff]
    %v1359 = vld [vmem:[#allocation7 + $0x228] sm:$0xff]
    %v1360 = vld [vmem:[#allocation7 + $0x230] sm:$0xff]
    %v1361 = vld [vmem:[#allocation7 + $0x238] sm:$0xff]
    %v1362 = vld [vmem:[#allocation7 + $0x240] sm:$0xff]
    %v1363 = vld [vmem:[#allocation7 + $0x248] sm:$0xff]
    %v1364 = vld [vmem:[#allocation7 + $0x250] sm:$0xff]
    %v1365 = vld [vmem:[#allocation7 + $0x258] sm:$0xff]
    %v1366 = vld [vmem:[#allocation7 + $0x260] sm:$0xff]
    %v1367 = vld [vmem:[#allocation7 + $0x268] sm:$0xff]
    %v1368 = vld [vmem:[#allocation7 + $0x270] sm:$0xff]
    %v1369 = vld [vmem:[#allocation7 + $0x278] sm:$0xff]
    %v1370 = vld [vmem:[#allocation7 + $0x280] sm:$0xff]
    %v1371 = vld [vmem:[#allocation7 + $0x288] sm:$0xff]
    %v1372 = vld [vmem:[#allocation7 + $0x290] sm:$0xff]
    %v1373 = vld [vmem:[#allocation7 + $0x298] sm:$0xff]
    %v1374 = vld [vmem:[#allocation7 + $0x2a0] sm:$0xff]
    %v1375 = vld [vmem:[#allocation7 + $0x2a8] sm:$0xff]
    %v1376 = vld [vmem:[#allocation7 + $0x2b0] sm:$0xff]
    %v1377 = vld [vmem:[#allocation7 + $0x2b8] sm:$0xff]
    %v1378 = vld [vmem:[#allocation7 + $0x2c0] sm:$0xff]
    %v1379 = vld [vmem:[#allocation7 + $0x2c8] sm:$0xff]
    %v1380 = vld [vmem:[#allocation7 + $0x2d0] sm:$0xff]
    %v1381 = vld [vmem:[#allocation7 + $0x2d8] sm:$0xff]
    %v1382 = vld [vmem:[#allocation7 + $0x2e0] sm:$0xff]
    %v1383 = vld [vmem:[#allocation7 + $0x2e8] sm:$0xff]
    %v1384 = vld [vmem:[#allocation7 + $0x2f0] sm:$0xff]
    %v1385 = vld [vmem:[#allocation7 + $0x2f8] sm:$0xff]
    %v1386 = vld [vmem:[#allocation7 + $0x300] sm:$0xff]
    %v1387 = vld [vmem:[#allocation7 + $0x308] sm:$0xff]
    %v1388 = vld [vmem:[#allocation7 + $0x310] sm:$0xff]
    %v1389 = vld [vmem:[#allocation7 + $0x318] sm:$0xff]
    %v1390 = vld [vmem:[#allocation7 + $0x320] sm:$0xff]
    %v1391 = vld [vmem:[#allocation7 + $0x328] sm:$0xff]
    %v1392 = vld [vmem:[#allocation7 + $0x330] sm:$0xff]
    %v1393 = vld [vmem:[#allocation7 + $0x338] sm:$0xff]
    %v1394 = vld [vmem:[#allocation7 + $0x340] sm:$0xff]
    %v1395 = vld [vmem:[#allocation7 + $0x348] sm:$0xff]
    %v1396 = vld [vmem:[#allocation7 + $0x350] sm:$0xff]
    %v1397 = vld [vmem:[#allocation7 + $0x358] sm:$0xff]
    %v1398 = vld [vmem:[#allocation7 + $0x360] sm:$0xff]
    %v1399 = vld [vmem:[#allocation7 + $0x368] sm:$0xff]
    %v1400 = vld [vmem:[#allocation7 + $0x370] sm:$0xff]
    %v1401 = vld [vmem:[#allocation7 + $0x378] sm:$0xff]
    %v1402 = vld [vmem:[#allocation7 + $0x380] sm:$0xff]
    %v1403 = vld [vmem:[#allocation7 + $0x388] sm:$0xff]
    %v1404 = vld [vmem:[#allocation7 + $0x390] sm:$0xff]
    %v1405 = vld [vmem:[#allocation7 + $0x398] sm:$0xff]
    %v1406 = vld [vmem:[#allocation7 + $0x3a0] sm:$0xff]
    %v1407 = vld [vmem:[#allocation7 + $0x3a8] sm:$0xff]
    %v1408 = vld [vmem:[#allocation7 + $0x3b0] sm:$0xff]
    %v1409 = vld [vmem:[#allocation7 + $0x3b8] sm:$0xff]
    %v1410 = vld [vmem:[#allocation7 + $0x3c0] sm:$0xff]
    %v1411 = vld [vmem:[#allocation7 + $0x3c8] sm:$0xff]
    %v1412 = vld [vmem:[#allocation7 + $0x3d0] sm:$0xff]
    %v1413 = vld [vmem:[#allocation7 + $0x3d8] sm:$0xff]
    %v1414 = vld [vmem:[#allocation7 + $0x3e0] sm:$0xff]
    %v1415 = vld [vmem:[#allocation7 + $0x3e8] sm:$0xff]
    %v1416 = vld [vmem:[#allocation7 + $0x3f0] sm:$0xff]
    %v1417 = vld [vmem:[#allocation7 + $0x3f8] sm:$0xff]
    %v1418 = vld [vmem:[#allocation9] sm:$0xf]
    %v1420 = vlaneseq
    %v1421 = vshrl.u32 %v1420, 7
    %v1422 = vsub.s32 0, %v1421
    %v1423 = vrot.slane %v1418, %v1422
    %v1424 = vlaneseq
    %v1425 = vshrl.u32 %v1424, 7
    %v1426 = vsub.s32 1, %v1425
    %v1427 = vrot.slane %v1418, %v1426
    %v1428 = vlaneseq
    %v1429 = vshrl.u32 %v1428, 7
    %v1430 = vsub.s32 2, %v1429
    %v1431 = vrot.slane %v1418, %v1430
    %v1432 = vlaneseq
    %v1433 = vshrl.u32 %v1432, 7
    %v1434 = vsub.s32 3, %v1433
    %v1435 = vrot.slane %v1418, %v1434
    %v1568 = vunpack.c.l.b16 %v1290
    %v1569 = vunpack.c.h.b16 %v1290
    %v1570 = vunpack.c.l.b16 %v1291
    %v1571 = vunpack.c.h.b16 %v1291
    %v1572 = vunpack.c.l.b16 %v1292
    %v1573 = vunpack.c.h.b16 %v1292
    %v1574 = vunpack.c.l.b16 %v1293
    %v1575 = vunpack.c.h.b16 %v1293
    %v1576 = vunpack.c.l.b16 %v1294
    %v1577 = vunpack.c.h.b16 %v1294
    %v1578 = vunpack.c.l.b16 %v1295
    %v1579 = vunpack.c.h.b16 %v1295
    %v1580 = vunpack.c.l.b16 %v1296
    %v1581 = vunpack.c.h.b16 %v1296
    %v1582 = vunpack.c.l.b16 %v1297
    %v1583 = vunpack.c.h.b16 %v1297
    %v1584 = vunpack.c.l.b16 %v1298
    %v1585 = vunpack.c.h.b16 %v1298
    %v1586 = vunpack.c.l.b16 %v1299
    %v1587 = vunpack.c.h.b16 %v1299
    %v1588 = vunpack.c.l.b16 %v1300
    %v1589 = vunpack.c.h.b16 %v1300
    %v1590 = vunpack.c.l.b16 %v1301
    %v1591 = vunpack.c.h.b16 %v1301
    %v1592 = vunpack.c.l.b16 %v1302
    %v1593 = vunpack.c.h.b16 %v1302
    %v1594 = vunpack.c.l.b16 %v1303
    %v1595 = vunpack.c.h.b16 %v1303
    %v1596 = vunpack.c.l.b16 %v1304
    %v1597 = vunpack.c.h.b16 %v1304
    %v1598 = vunpack.c.l.b16 %v1305
    %v1599 = vunpack.c.h.b16 %v1305
    %v1600 = vunpack.c.l.b16 %v1306
    %v1601 = vunpack.c.h.b16 %v1306
    %v1602 = vunpack.c.l.b16 %v1307
    %v1603 = vunpack.c.h.b16 %v1307
    %v1604 = vunpack.c.l.b16 %v1308
    %v1605 = vunpack.c.h.b16 %v1308
    %v1606 = vunpack.c.l.b16 %v1309
    %v1607 = vunpack.c.h.b16 %v1309
    %v1608 = vunpack.c.l.b16 %v1310
    %v1609 = vunpack.c.h.b16 %v1310
    %v1610 = vunpack.c.l.b16 %v1311
    %v1611 = vunpack.c.h.b16 %v1311
    %v1612 = vunpack.c.l.b16 %v1312
    %v1613 = vunpack.c.h.b16 %v1312
    %v1614 = vunpack.c.l.b16 %v1313
    %v1615 = vunpack.c.h.b16 %v1313
    %v1616 = vunpack.c.l.b16 %v1314
    %v1617 = vunpack.c.h.b16 %v1314
    %v1618 = vunpack.c.l.b16 %v1315
    %v1619 = vunpack.c.h.b16 %v1315
    %v1620 = vunpack.c.l.b16 %v1316
    %v1621 = vunpack.c.h.b16 %v1316
    %v1622 = vunpack.c.l.b16 %v1317
    %v1623 = vunpack.c.h.b16 %v1317
    %v1624 = vunpack.c.l.b16 %v1318
    %v1625 = vunpack.c.h.b16 %v1318
    %v1626 = vunpack.c.l.b16 %v1319
    %v1627 = vunpack.c.h.b16 %v1319
    %v1628 = vunpack.c.l.b16 %v1320
    %v1629 = vunpack.c.h.b16 %v1320
    %v1630 = vunpack.c.l.b16 %v1321
    %v1631 = vunpack.c.h.b16 %v1321
    %v1632 = vunpack.c.l.b16 %v1322
    %v1633 = vunpack.c.h.b16 %v1322
    %v1634 = vunpack.c.l.b16 %v1323
    %v1635 = vunpack.c.h.b16 %v1323
    %v1636 = vunpack.c.l.b16 %v1324
    %v1637 = vunpack.c.h.b16 %v1324
    %v1638 = vunpack.c.l.b16 %v1325
    %v1639 = vunpack.c.h.b16 %v1325
    %v1640 = vunpack.c.l.b16 %v1326
    %v1641 = vunpack.c.h.b16 %v1326
    %v1642 = vunpack.c.l.b16 %v1327
    %v1643 = vunpack.c.h.b16 %v1327
    %v1644 = vunpack.c.l.b16 %v1328
    %v1645 = vunpack.c.h.b16 %v1328
    %v1646 = vunpack.c.l.b16 %v1329
    %v1647 = vunpack.c.h.b16 %v1329
    %v1648 = vunpack.c.l.b16 %v1330
    %v1649 = vunpack.c.h.b16 %v1330
    %v1650 = vunpack.c.l.b16 %v1331
    %v1651 = vunpack.c.h.b16 %v1331
    %v1652 = vunpack.c.l.b16 %v1332
    %v1653 = vunpack.c.h.b16 %v1332
    %v1654 = vunpack.c.l.b16 %v1333
    %v1655 = vunpack.c.h.b16 %v1333
    %v1656 = vunpack.c.l.b16 %v1334
    %v1657 = vunpack.c.h.b16 %v1334
    %v1658 = vunpack.c.l.b16 %v1335
    %v1659 = vunpack.c.h.b16 %v1335
    %v1660 = vunpack.c.l.b16 %v1336
    %v1661 = vunpack.c.h.b16 %v1336
    %v1662 = vunpack.c.l.b16 %v1337
    %v1663 = vunpack.c.h.b16 %v1337
    %v1664 = vunpack.c.l.b16 %v1338
    %v1665 = vunpack.c.h.b16 %v1338
    %v1666 = vunpack.c.l.b16 %v1339
    %v1667 = vunpack.c.h.b16 %v1339
    %v1668 = vunpack.c.l.b16 %v1340
    %v1669 = vunpack.c.h.b16 %v1340
    %v1670 = vunpack.c.l.b16 %v1341
    %v1671 = vunpack.c.h.b16 %v1341
    %v1672 = vunpack.c.l.b16 %v1342
    %v1673 = vunpack.c.h.b16 %v1342
    %v1674 = vunpack.c.l.b16 %v1343
    %v1675 = vunpack.c.h.b16 %v1343
    %v1676 = vunpack.c.l.b16 %v1344
    %v1677 = vunpack.c.h.b16 %v1344
    %v1678 = vunpack.c.l.b16 %v1345
    %v1679 = vunpack.c.h.b16 %v1345
    %v1680 = vunpack.c.l.b16 %v1346
    %v1681 = vunpack.c.h.b16 %v1346
    %v1682 = vunpack.c.l.b16 %v1347
    %v1683 = vunpack.c.h.b16 %v1347
    %v1684 = vunpack.c.l.b16 %v1348
    %v1685 = vunpack.c.h.b16 %v1348
    %v1686 = vunpack.c.l.b16 %v1349
    %v1687 = vunpack.c.h.b16 %v1349
    %v1688 = vunpack.c.l.b16 %v1350
    %v1689 = vunpack.c.h.b16 %v1350
    %v1690 = vunpack.c.l.b16 %v1351
    %v1691 = vunpack.c.h.b16 %v1351
    %v1692 = vunpack.c.l.b16 %v1352
    %v1693 = vunpack.c.h.b16 %v1352
    %v1694 = vunpack.c.l.b16 %v1353
    %v1695 = vunpack.c.h.b16 %v1353
    %v1696 = vunpack.c.l.b16 %v1354
    %v1697 = vunpack.c.h.b16 %v1354
    %v1698 = vunpack.c.l.b16 %v1355
    %v1699 = vunpack.c.h.b16 %v1355
    %v1700 = vunpack.c.l.b16 %v1356
    %v1701 = vunpack.c.h.b16 %v1356
    %v1702 = vunpack.c.l.b16 %v1357
    %v1703 = vunpack.c.h.b16 %v1357
    %v1704 = vunpack.c.l.b16 %v1358
    %v1705 = vunpack.c.h.b16 %v1358
    %v1706 = vunpack.c.l.b16 %v1359
    %v1707 = vunpack.c.h.b16 %v1359
    %v1708 = vunpack.c.l.b16 %v1360
    %v1709 = vunpack.c.h.b16 %v1360
    %v1710 = vunpack.c.l.b16 %v1361
    %v1711 = vunpack.c.h.b16 %v1361
    %v1712 = vunpack.c.l.b16 %v1362
    %v1713 = vunpack.c.h.b16 %v1362
    %v1714 = vunpack.c.l.b16 %v1363
    %v1715 = vunpack.c.h.b16 %v1363
    %v1716 = vunpack.c.l.b16 %v1364
    %v1717 = vunpack.c.h.b16 %v1364
    %v1718 = vunpack.c.l.b16 %v1365
    %v1719 = vunpack.c.h.b16 %v1365
    %v1720 = vunpack.c.l.b16 %v1366
    %v1721 = vunpack.c.h.b16 %v1366
    %v1722 = vunpack.c.l.b16 %v1367
    %v1723 = vunpack.c.h.b16 %v1367
    %v1724 = vunpack.c.l.b16 %v1368
    %v1725 = vunpack.c.h.b16 %v1368
    %v1726 = vunpack.c.l.b16 %v1369
    %v1727 = vunpack.c.h.b16 %v1369
    %v1728 = vunpack.c.l.b16 %v1370
    %v1729 = vunpack.c.h.b16 %v1370
    %v1730 = vunpack.c.l.b16 %v1371
    %v1731 = vunpack.c.h.b16 %v1371
    %v1732 = vunpack.c.l.b16 %v1372
    %v1733 = vunpack.c.h.b16 %v1372
    %v1734 = vunpack.c.l.b16 %v1373
    %v1735 = vunpack.c.h.b16 %v1373
    %v1736 = vunpack.c.l.b16 %v1374
    %v1737 = vunpack.c.h.b16 %v1374
    %v1738 = vunpack.c.l.b16 %v1375
    %v1739 = vunpack.c.h.b16 %v1375
    %v1740 = vunpack.c.l.b16 %v1376
    %v1741 = vunpack.c.h.b16 %v1376
    %v1742 = vunpack.c.l.b16 %v1377
    %v1743 = vunpack.c.h.b16 %v1377
    %v1744 = vunpack.c.l.b16 %v1378
    %v1745 = vunpack.c.h.b16 %v1378
    %v1746 = vunpack.c.l.b16 %v1379
    %v1747 = vunpack.c.h.b16 %v1379
    %v1748 = vunpack.c.l.b16 %v1380
    %v1749 = vunpack.c.h.b16 %v1380
    %v1750 = vunpack.c.l.b16 %v1381
    %v1751 = vunpack.c.h.b16 %v1381
    %v1752 = vunpack.c.l.b16 %v1382
    %v1753 = vunpack.c.h.b16 %v1382
    %v1754 = vunpack.c.l.b16 %v1383
    %v1755 = vunpack.c.h.b16 %v1383
    %v1756 = vunpack.c.l.b16 %v1384
    %v1757 = vunpack.c.h.b16 %v1384
    %v1758 = vunpack.c.l.b16 %v1385
    %v1759 = vunpack.c.h.b16 %v1385
    %v1760 = vunpack.c.l.b16 %v1386
    %v1761 = vunpack.c.h.b16 %v1386
    %v1762 = vunpack.c.l.b16 %v1387
    %v1763 = vunpack.c.h.b16 %v1387
    %v1764 = vunpack.c.l.b16 %v1388
    %v1765 = vunpack.c.h.b16 %v1388
    %v1766 = vunpack.c.l.b16 %v1389
    %v1767 = vunpack.c.h.b16 %v1389
    %v1768 = vunpack.c.l.b16 %v1390
    %v1769 = vunpack.c.h.b16 %v1390
    %v1770 = vunpack.c.l.b16 %v1391
    %v1771 = vunpack.c.h.b16 %v1391
    %v1772 = vunpack.c.l.b16 %v1392
    %v1773 = vunpack.c.h.b16 %v1392
    %v1774 = vunpack.c.l.b16 %v1393
    %v1775 = vunpack.c.h.b16 %v1393
    %v1776 = vunpack.c.l.b16 %v1394
    %v1777 = vunpack.c.h.b16 %v1394
    %v1778 = vunpack.c.l.b16 %v1395
    %v1779 = vunpack.c.h.b16 %v1395
    %v1780 = vunpack.c.l.b16 %v1396
    %v1781 = vunpack.c.h.b16 %v1396
    %v1782 = vunpack.c.l.b16 %v1397
    %v1783 = vunpack.c.h.b16 %v1397
    %v1784 = vunpack.c.l.b16 %v1398
    %v1785 = vunpack.c.h.b16 %v1398
    %v1786 = vunpack.c.l.b16 %v1399
    %v1787 = vunpack.c.h.b16 %v1399
    %v1788 = vunpack.c.l.b16 %v1400
    %v1789 = vunpack.c.h.b16 %v1400
    %v1790 = vunpack.c.l.b16 %v1401
    %v1791 = vunpack.c.h.b16 %v1401
    %v1792 = vunpack.c.l.b16 %v1402
    %v1793 = vunpack.c.h.b16 %v1402
    %v1794 = vunpack.c.l.b16 %v1403
    %v1795 = vunpack.c.h.b16 %v1403
    %v1796 = vunpack.c.l.b16 %v1404
    %v1797 = vunpack.c.h.b16 %v1404
    %v1798 = vunpack.c.l.b16 %v1405
    %v1799 = vunpack.c.h.b16 %v1405
    %v1800 = vunpack.c.l.b16 %v1406
    %v1801 = vunpack.c.h.b16 %v1406
    %v1802 = vunpack.c.l.b16 %v1407
    %v1803 = vunpack.c.h.b16 %v1407
    %v1804 = vunpack.c.l.b16 %v1408
    %v1805 = vunpack.c.h.b16 %v1408
    %v1806 = vunpack.c.l.b16 %v1409
    %v1807 = vunpack.c.h.b16 %v1409
    %v1808 = vunpack.c.l.b16 %v1410
    %v1809 = vunpack.c.h.b16 %v1410
    %v1810 = vunpack.c.l.b16 %v1411
    %v1811 = vunpack.c.h.b16 %v1411
    %v1812 = vunpack.c.l.b16 %v1412
    %v1813 = vunpack.c.h.b16 %v1412
    %v1814 = vunpack.c.l.b16 %v1413
    %v1815 = vunpack.c.h.b16 %v1413
    %v1816 = vunpack.c.l.b16 %v1414
    %v1817 = vunpack.c.h.b16 %v1414
    %v1818 = vunpack.c.l.b16 %v1415
    %v1819 = vunpack.c.h.b16 %v1415
    %v1820 = vunpack.c.l.b16 %v1416
    %v1821 = vunpack.c.h.b16 %v1416
    %v1822 = vunpack.c.l.b16 %v1417
    %v1823 = vunpack.c.h.b16 %v1417
    %v1824 = vpack.c.b16 %v1572, %v1568
    %v1825 = vpack.c.b16 %v1573, %v1569
    %v1826 = vpack.c.b16 %v1574, %v1570
    %v1827 = vpack.c.b16 %v1575, %v1571
    %v1828 = vpack.c.b16 %v1580, %v1576
    %v1829 = vpack.c.b16 %v1581, %v1577
    %v1830 = vpack.c.b16 %v1582, %v1578
    %v1831 = vpack.c.b16 %v1583, %v1579
    %v1832 = vpack.c.b16 %v1588, %v1584
    %v1833 = vpack.c.b16 %v1589, %v1585
    %v1834 = vpack.c.b16 %v1590, %v1586
    %v1835 = vpack.c.b16 %v1591, %v1587
    %v1836 = vpack.c.b16 %v1596, %v1592
    %v1837 = vpack.c.b16 %v1597, %v1593
    %v1838 = vpack.c.b16 %v1598, %v1594
    %v1839 = vpack.c.b16 %v1599, %v1595
    %v1840 = vpack.c.b16 %v1604, %v1600
    %v1841 = vpack.c.b16 %v1605, %v1601
    %v1842 = vpack.c.b16 %v1606, %v1602
    %v1843 = vpack.c.b16 %v1607, %v1603
    %v1844 = vpack.c.b16 %v1612, %v1608
    %v1845 = vpack.c.b16 %v1613, %v1609
    %v1846 = vpack.c.b16 %v1614, %v1610
    %v1847 = vpack.c.b16 %v1615, %v1611
    %v1848 = vpack.c.b16 %v1620, %v1616
    %v1849 = vpack.c.b16 %v1621, %v1617
    %v1850 = vpack.c.b16 %v1622, %v1618
    %v1851 = vpack.c.b16 %v1623, %v1619
    %v1852 = vpack.c.b16 %v1628, %v1624
    %v1853 = vpack.c.b16 %v1629, %v1625
    %v1854 = vpack.c.b16 %v1630, %v1626
    %v1855 = vpack.c.b16 %v1631, %v1627
    %v1856 = vpack.c.b16 %v1636, %v1632
    %v1857 = vpack.c.b16 %v1637, %v1633
    %v1858 = vpack.c.b16 %v1638, %v1634
    %v1859 = vpack.c.b16 %v1639, %v1635
    %v1860 = vpack.c.b16 %v1644, %v1640
    %v1861 = vpack.c.b16 %v1645, %v1641
    %v1862 = vpack.c.b16 %v1646, %v1642
    %v1863 = vpack.c.b16 %v1647, %v1643
    %v1864 = vpack.c.b16 %v1652, %v1648
    %v1865 = vpack.c.b16 %v1653, %v1649
    %v1866 = vpack.c.b16 %v1654, %v1650
    %v1867 = vpack.c.b16 %v1655, %v1651
    %v1868 = vpack.c.b16 %v1660, %v1656
    %v1869 = vpack.c.b16 %v1661, %v1657
    %v1870 = vpack.c.b16 %v1662, %v1658
    %v1871 = vpack.c.b16 %v1663, %v1659
    %v1872 = vpack.c.b16 %v1668, %v1664
    %v1873 = vpack.c.b16 %v1669, %v1665
    %v1874 = vpack.c.b16 %v1670, %v1666
    %v1875 = vpack.c.b16 %v1671, %v1667
    %v1876 = vpack.c.b16 %v1676, %v1672
    %v1877 = vpack.c.b16 %v1677, %v1673
    %v1878 = vpack.c.b16 %v1678, %v1674
    %v1879 = vpack.c.b16 %v1679, %v1675
    %v1880 = vpack.c.b16 %v1684, %v1680
    %v1881 = vpack.c.b16 %v1685, %v1681
    %v1882 = vpack.c.b16 %v1686, %v1682
    %v1883 = vpack.c.b16 %v1687, %v1683
    %v1884 = vpack.c.b16 %v1692, %v1688
    %v1885 = vpack.c.b16 %v1693, %v1689
    %v1886 = vpack.c.b16 %v1694, %v1690
    %v1887 = vpack.c.b16 %v1695, %v1691
    %v1888 = vpack.c.b16 %v1700, %v1696
    %v1889 = vpack.c.b16 %v1701, %v1697
    %v1890 = vpack.c.b16 %v1702, %v1698
    %v1891 = vpack.c.b16 %v1703, %v1699
    %v1892 = vpack.c.b16 %v1708, %v1704
    %v1893 = vpack.c.b16 %v1709, %v1705
    %v1894 = vpack.c.b16 %v1710, %v1706
    %v1895 = vpack.c.b16 %v1711, %v1707
    %v1896 = vpack.c.b16 %v1716, %v1712
    %v1897 = vpack.c.b16 %v1717, %v1713
    %v1898 = vpack.c.b16 %v1718, %v1714
    %v1899 = vpack.c.b16 %v1719, %v1715
    %v1900 = vpack.c.b16 %v1724, %v1720
    %v1901 = vpack.c.b16 %v1725, %v1721
    %v1902 = vpack.c.b16 %v1726, %v1722
    %v1903 = vpack.c.b16 %v1727, %v1723
    %v1904 = vpack.c.b16 %v1732, %v1728
    %v1905 = vpack.c.b16 %v1733, %v1729
    %v1906 = vpack.c.b16 %v1734, %v1730
    %v1907 = vpack.c.b16 %v1735, %v1731
    %v1908 = vpack.c.b16 %v1740, %v1736
    %v1909 = vpack.c.b16 %v1741, %v1737
    %v1910 = vpack.c.b16 %v1742, %v1738
    %v1911 = vpack.c.b16 %v1743, %v1739
    %v1912 = vpack.c.b16 %v1748, %v1744
    %v1913 = vpack.c.b16 %v1749, %v1745
    %v1914 = vpack.c.b16 %v1750, %v1746
    %v1915 = vpack.c.b16 %v1751, %v1747
    %v1916 = vpack.c.b16 %v1756, %v1752
    %v1917 = vpack.c.b16 %v1757, %v1753
    %v1918 = vpack.c.b16 %v1758, %v1754
    %v1919 = vpack.c.b16 %v1759, %v1755
    %v1920 = vpack.c.b16 %v1764, %v1760
    %v1921 = vpack.c.b16 %v1765, %v1761
    %v1922 = vpack.c.b16 %v1766, %v1762
    %v1923 = vpack.c.b16 %v1767, %v1763
    %v1924 = vpack.c.b16 %v1772, %v1768
    %v1925 = vpack.c.b16 %v1773, %v1769
    %v1926 = vpack.c.b16 %v1774, %v1770
    %v1927 = vpack.c.b16 %v1775, %v1771
    %v1928 = vpack.c.b16 %v1780, %v1776
    %v1929 = vpack.c.b16 %v1781, %v1777
    %v1930 = vpack.c.b16 %v1782, %v1778
    %v1931 = vpack.c.b16 %v1783, %v1779
    %v1932 = vpack.c.b16 %v1788, %v1784
    %v1933 = vpack.c.b16 %v1789, %v1785
    %v1934 = vpack.c.b16 %v1790, %v1786
    %v1935 = vpack.c.b16 %v1791, %v1787
    %v1936 = vpack.c.b16 %v1796, %v1792
    %v1937 = vpack.c.b16 %v1797, %v1793
    %v1938 = vpack.c.b16 %v1798, %v1794
    %v1939 = vpack.c.b16 %v1799, %v1795
    %v1940 = vpack.c.b16 %v1804, %v1800
    %v1941 = vpack.c.b16 %v1805, %v1801
    %v1942 = vpack.c.b16 %v1806, %v1802
    %v1943 = vpack.c.b16 %v1807, %v1803
    %v1944 = vpack.c.b16 %v1812, %v1808
    %v1945 = vpack.c.b16 %v1813, %v1809
    %v1946 = vpack.c.b16 %v1814, %v1810
    %v1947 = vpack.c.b16 %v1815, %v1811
    %v1948 = vpack.c.b16 %v1820, %v1816
    %v1949 = vpack.c.b16 %v1821, %v1817
    %v1950 = vpack.c.b16 %v1822, %v1818
    %v1951 = vpack.c.b16 %v1823, %v1819
    %2080 = vmatprep.subr.bf16.mxu0 %v1825
    %2081 = vmatpush1.bf16.msra.mxu0 %v1824
    %2082 = vmatprep.subr.bf16.mxu0 %v1829
    %2083 = vmatpush1.bf16.msra.mxu0 %v1828
    %2084 = vmatprep.subr.bf16.mxu0 %v1833
    %2085 = vmatpush1.bf16.msra.mxu0 %v1832
    %2086 = vmatprep.subr.bf16.mxu0 %v1837
    %2087 = vmatpush1.bf16.msra.mxu0 %v1836
    %2088 = vmatprep.subr.bf16.mxu0 %v1841
    %2089 = vmatpush1.bf16.msra.mxu0 %v1840
    %2090 = vmatprep.subr.bf16.mxu0 %v1845
    %2091 = vmatpush1.bf16.msra.mxu0 %v1844
    %2092 = vmatprep.subr.bf16.mxu0 %v1849
    %2093 = vmatpush1.bf16.msra.mxu0 %v1848
    %2094 = vmatprep.subr.bf16.mxu0 %v1853
    %2095 = vmatpush1.bf16.msra.mxu0 %v1852
    %2096 = vmatprep.subr.bf16.mxu0 %v1857
    %2097 = vmatpush1.bf16.msra.mxu0 %v1856
    %2098 = vmatprep.subr.bf16.mxu0 %v1861
    %2099 = vmatpush1.bf16.msra.mxu0 %v1860
    %2100 = vmatprep.subr.bf16.mxu0 %v1865
    %2101 = vmatpush1.bf16.msra.mxu0 %v1864
    %2102 = vmatprep.subr.bf16.mxu0 %v1869
    %2103 = vmatpush1.bf16.msra.mxu0 %v1868
    %2104 = vmatprep.subr.bf16.mxu0 %v1873
    %2105 = vmatpush1.bf16.msra.mxu0 %v1872
    %2106 = vmatprep.subr.bf16.mxu0 %v1877
    %2107 = vmatpush1.bf16.msra.mxu0 %v1876
    %2108 = vmatprep.subr.bf16.mxu0 %v1881
    %2109 = vmatpush1.bf16.msra.mxu0 %v1880
    %2110 = vmatprep.subr.bf16.mxu0 %v1885
    %2111 = vmatpush1.bf16.msra.mxu0 %v1884
    %2112 = vmatprep.mubr.bf16.mxu0 %v1287
    %2113 = vmatmul.mubr.bf16.gmra.mrb[0].mxu0 %v1286
    %v2114 = vpop.f32.mrb[0].mxu0
    %v2115 = vadd.f32 %v1423, %v2114
    %v2116 = vpop.f32.mrb[0].mxu0
    %v2117 = vadd.f32 %v1427, %v2116
    %v2118 = vpop.f32.mrb[0].mxu0
    %v2119 = vadd.f32 %v1423, %v2118
    %v2120 = vpop.f32.mrb[0].mxu0
    %v2121 = vadd.f32 %v1427, %v2120
    %2122 = vdwg.mxu0
    %2123 = vmatprep.subr.bf16.mxu0 %v1889
    %2124 = vmatpush1.bf16.msra.mxu0 %v1888
    %2125 = vmatprep.subr.bf16.mxu0 %v1893
    %2126 = vmatpush1.bf16.msra.mxu0 %v1892
    %2127 = vmatprep.subr.bf16.mxu0 %v1897
    %2128 = vmatpush1.bf16.msra.mxu0 %v1896
    %2129 = vmatprep.subr.bf16.mxu0 %v1901
    %2130 = vmatpush1.bf16.msra.mxu0 %v1900
    %2131 = vmatprep.subr.bf16.mxu0 %v1905
    %2132 = vmatpush1.bf16.msra.mxu0 %v1904
    %2133 = vmatprep.subr.bf16.mxu0 %v1909
    %2134 = vmatpush1.bf16.msra.mxu0 %v1908
    %2135 = vmatprep.subr.bf16.mxu0 %v1913
    %2136 = vmatpush1.bf16.msra.mxu0 %v1912
    %2137 = vmatprep.subr.bf16.mxu0 %v1917
    %2138 = vmatpush1.bf16.msra.mxu0 %v1916
    %2139 = vmatprep.subr.bf16.mxu0 %v1921
    %2140 = vmatpush1.bf16.msra.mxu0 %v1920
    %2141 = vmatprep.subr.bf16.mxu0 %v1925
    %2142 = vmatpush1.bf16.msra.mxu0 %v1924
    %2143 = vmatprep.subr.bf16.mxu0 %v1929
    %2144 = vmatpush1.bf16.msra.mxu0 %v1928
    %2145 = vmatprep.subr.bf16.mxu0 %v1933
    %2146 = vmatpush1.bf16.msra.mxu0 %v1932
    %2147 = vmatprep.subr.bf16.mxu0 %v1937
    %2148 = vmatpush1.bf16.msra.mxu0 %v1936
    %2149 = vmatprep.subr.bf16.mxu0 %v1941
    %2150 = vmatpush1.bf16.msra.mxu0 %v1940
    %2151 = vmatprep.subr.bf16.mxu0 %v1945
    %2152 = vmatpush1.bf16.msra.mxu0 %v1944
    %2153 = vmatprep.subr.bf16.mxu0 %v1949
    %2154 = vmatpush1.bf16.msra.mxu0 %v1948
    %2155 = vmatprep.mubr.bf16.mxu0 %v1289
    %2156 = vmatmul.mubr.bf16.gmra.mrb[0].mxu0 %v1288
    %v2157 = vpop.f32.mrb[0].mxu0
    %v2158 = vadd.f32 %v2115, %v2157
    %v2159 = vpop.f32.mrb[0].mxu0
    %v2160 = vadd.f32 %v2117, %v2159
    %v2161 = vpop.f32.mrb[0].mxu0
    %v2162 = vadd.f32 %v2119, %v2161
    %v2163 = vpop.f32.mrb[0].mxu0
    %v2164 = vadd.f32 %v2121, %v2163
    %2165 = vdwg.mxu0
    %2166 = vmatprep.subr.bf16.mxu0 %v1827
    %2167 = vmatpush1.bf16.msra.mxu0 %v1826
    %2168 = vmatprep.subr.bf16.mxu0 %v1831
    %2169 = vmatpush1.bf16.msra.mxu0 %v1830
    %2170 = vmatprep.subr.bf16.mxu0 %v1835
    %2171 = vmatpush1.bf16.msra.mxu0 %v1834
    %2172 = vmatprep.subr.bf16.mxu0 %v1839
    %2173 = vmatpush1.bf16.msra.mxu0 %v1838
    %2174 = vmatprep.subr.bf16.mxu0 %v1843
    %2175 = vmatpush1.bf16.msra.mxu0 %v1842
    %2176 = vmatprep.subr.bf16.mxu0 %v1847
    %2177 = vmatpush1.bf16.msra.mxu0 %v1846
    %2178 = vmatprep.subr.bf16.mxu0 %v1851
    %2179 = vmatpush1.bf16.msra.mxu0 %v1850
    %2180 = vmatprep.subr.bf16.mxu0 %v1855
    %2181 = vmatpush1.bf16.msra.mxu0 %v1854
    %2182 = vmatprep.subr.bf16.mxu0 %v1859
    %2183 = vmatpush1.bf16.msra.mxu0 %v1858
    %2184 = vmatprep.subr.bf16.mxu0 %v1863
    %2185 = vmatpush1.bf16.msra.mxu0 %v1862
    %2186 = vmatprep.subr.bf16.mxu0 %v1867
    %2187 = vmatpush1.bf16.msra.mxu0 %v1866
    %2188 = vmatprep.subr.bf16.mxu0 %v1871
    %2189 = vmatpush1.bf16.msra.mxu0 %v1870
    %2190 = vmatprep.subr.bf16.mxu0 %v1875
    %2191 = vmatpush1.bf16.msra.mxu0 %v1874
    %2192 = vmatprep.subr.bf16.mxu0 %v1879
    %2193 = vmatpush1.bf16.msra.mxu0 %v1878
    %2194 = vmatprep.subr.bf16.mxu0 %v1883
    %2195 = vmatpush1.bf16.msra.mxu0 %v1882
    %2196 = vmatprep.subr.bf16.mxu0 %v1887
    %2197 = vmatpush1.bf16.msra.mxu0 %v1886
    %2198 = vmatprep.mubr.bf16.mxu0 %v1287
    %2199 = vmatmul.mubr.bf16.gmra.mrb[0].mxu0 %v1286
    %v2200 = vpop.f32.mrb[0].mxu0
    %v2201 = vadd.f32 %v1431, %v2200
    %v2202 = vpop.f32.mrb[0].mxu0
    %v2203 = vadd.f32 %v1435, %v2202
    %v2204 = vpop.f32.mrb[0].mxu0
    %v2205 = vadd.f32 %v1431, %v2204
    %v2206 = vpop.f32.mrb[0].mxu0
    %v2207 = vadd.f32 %v1435, %v2206
    %2208 = vdwg.mxu0
    %2209 = vmatprep.subr.bf16.mxu0 %v1891
    %2210 = vmatpush1.bf16.msra.mxu0 %v1890
    %2211 = vmatprep.subr.bf16.mxu0 %v1895
    %2212 = vmatpush1.bf16.msra.mxu0 %v1894
    %2213 = vmatprep.subr.bf16.mxu0 %v1899
    %2214 = vmatpush1.bf16.msra.mxu0 %v1898
    %2215 = vmatprep.subr.bf16.mxu0 %v1903
    %2216 = vmatpush1.bf16.msra.mxu0 %v1902
    %2217 = vmatprep.subr.bf16.mxu0 %v1907
    %2218 = vmatpush1.bf16.msra.mxu0 %v1906
    %2219 = vmatprep.subr.bf16.mxu0 %v1911
    %2220 = vmatpush1.bf16.msra.mxu0 %v1910
    %2221 = vmatprep.subr.bf16.mxu0 %v1915
    %2222 = vmatpush1.bf16.msra.mxu0 %v1914
    %2223 = vmatprep.subr.bf16.mxu0 %v1919
    %2224 = vmatpush1.bf16.msra.mxu0 %v1918
    %2225 = vmatprep.subr.bf16.mxu0 %v1923
    %2226 = vmatpush1.bf16.msra.mxu0 %v1922
    %2227 = vmatprep.subr.bf16.mxu0 %v1927
    %2228 = vmatpush1.bf16.msra.mxu0 %v1926
    %2229 = vmatprep.subr.bf16.mxu0 %v1931
    %2230 = vmatpush1.bf16.msra.mxu0 %v1930
    %2231 = vmatprep.subr.bf16.mxu0 %v1935
    %2232 = vmatpush1.bf16.msra.mxu0 %v1934
    %2233 = vmatprep.subr.bf16.mxu0 %v1939
    %2234 = vmatpush1.bf16.msra.mxu0 %v1938
    %2235 = vmatprep.subr.bf16.mxu0 %v1943
    %2236 = vmatpush1.bf16.msra.mxu0 %v1942
    %2237 = vmatprep.subr.bf16.mxu0 %v1947
    %2238 = vmatpush1.bf16.msra.mxu0 %v1946
    %2239 = vmatprep.subr.bf16.mxu0 %v1951
    %2240 = vmatpush1.bf16.msra.mxu0 %v1950
    %2241 = vmatprep.mubr.bf16.mxu0 %v1289
    %2242 = vmatmul.mubr.bf16.gmra.mrb[0].mxu0 %v1288
    %v2243 = vpop.f32.mrb[0].mxu0
    %v2244 = vadd.f32 %v2201, %v2243
    %v2245 = vpop.f32.mrb[0].mxu0
    %v2246 = vadd.f32 %v2203, %v2245
    %v2247 = vpop.f32.mrb[0].mxu0
    %v2248 = vadd.f32 %v2205, %v2247
    %v2249 = vpop.f32.mrb[0].mxu0
    %v2250 = vadd.f32 %v2207, %v2249
    %2251 = vdwg.mxu0
    %vm2252 = vcmp.ge.f32.partialorder %v2158, 0.0
    %vm2253 = vcmp.ge.f32.partialorder %v2160, 0.0
    %vm2254 = vcmp.ge.f32.partialorder %v2244, 0.0
    %vm2255 = vcmp.ge.f32.partialorder %v2246, 0.0
    %vm2256 = vcmp.ge.f32.partialorder %v2162, 0.0
    %vm2257 = vcmp.ge.f32.partialorder %v2164, 0.0
    %vm2258 = vcmp.ge.f32.partialorder %v2248, 0.0
    %vm2259 = vcmp.ge.f32.partialorder %v2250, 0.0
    %v2260 = vmul.f32 %v2158, 0.01
    %v2261 = vmul.f32 %v2160, 0.01
    %v2262 = vmul.f32 %v2244, 0.01
    %v2263 = vmul.f32 %v2246, 0.01
    %v2264 = vmul.f32 %v2162, 0.01
    %v2265 = vmul.f32 %v2164, 0.01
    %v2266 = vmul.f32 %v2248, 0.01
    %v2267 = vmul.f32 %v2250, 0.01
    %v2268 = vsel %vm2252, %v2158, %v2260
    %v2269 = vsel %vm2253, %v2160, %v2261
    %v2270 = vsel %vm2254, %v2244, %v2262
    %v2271 = vsel %vm2255, %v2246, %v2263
    %v2272 = vsel %vm2256, %v2162, %v2264
    %v2273 = vsel %vm2257, %v2164, %v2265
    %v2274 = vsel %vm2258, %v2248, %v2266
    %v2275 = vsel %vm2259, %v2250, %v2267
    %v2276 = vpack.c.bf16 %v2272, %v2268
    %v2277 = vpack.c.bf16 %v2273, %v2269
    %v2278 = vpack.c.bf16 %v2274, %v2270
    %v2279 = vpack.c.bf16 %v2275, %v2271
    %v2280 = vld [vmem:[#allocation10] sm:$0xf]
    %v2281 = vld [vmem:[#allocation10 + $0x4] sm:$0xf]
    %v2282 = vld [vmem:[#allocation10 + $0x8] sm:$0xf]
    %v2283 = vld [vmem:[#allocation10 + $0xc] sm:$0xf]
    %v2284 = vld [vmem:[#allocation10 + $0x10] sm:$0xf]
    %v2285 = vld [vmem:[#allocation10 + $0x14] sm:$0xf]
    %v2286 = vld [vmem:[#allocation10 + $0x18] sm:$0xf]
    %v2287 = vld [vmem:[#allocation10 + $0x1c] sm:$0xf]
    %v2288 = vld [vmem:[#allocation10 + $0x20] sm:$0xf]
    %v2289 = vld [vmem:[#allocation10 + $0x24] sm:$0xf]
    %v2290 = vld [vmem:[#allocation10 + $0x28] sm:$0xf]
    %v2291 = vld [vmem:[#allocation10 + $0x2c] sm:$0xf]
    %v2292 = vld [vmem:[#allocation10 + $0x30] sm:$0xf]
    %v2293 = vld [vmem:[#allocation10 + $0x34] sm:$0xf]
    %v2294 = vld [vmem:[#allocation10 + $0x38] sm:$0xf]
    %v2295 = vld [vmem:[#allocation10 + $0x3c] sm:$0xf]
    %v2296 = vld [vmem:[#allocation10 + $0x40] sm:$0xf]
    %v2297 = vld [vmem:[#allocation10 + $0x44] sm:$0xf]
    %v2298 = vld [vmem:[#allocation10 + $0x48] sm:$0xf]
    %v2299 = vld [vmem:[#allocation10 + $0x4c] sm:$0xf]
    %v2300 = vld [vmem:[#allocation10 + $0x50] sm:$0xf]
    %v2301 = vld [vmem:[#allocation10 + $0x54] sm:$0xf]
    %v2302 = vld [vmem:[#allocation10 + $0x58] sm:$0xf]
    %v2303 = vld [vmem:[#allocation10 + $0x5c] sm:$0xf]
    %v2304 = vld [vmem:[#allocation10 + $0x60] sm:$0xf]
    %v2305 = vld [vmem:[#allocation10 + $0x64] sm:$0xf]
    %v2306 = vld [vmem:[#allocation10 + $0x68] sm:$0xf]
    %v2307 = vld [vmem:[#allocation10 + $0x6c] sm:$0xf]
    %v2308 = vld [vmem:[#allocation10 + $0x70] sm:$0xf]
    %v2309 = vld [vmem:[#allocation10 + $0x74] sm:$0xf]
    %v2310 = vld [vmem:[#allocation10 + $0x78] sm:$0xf]
    %v2311 = vld [vmem:[#allocation10 + $0x7c] sm:$0xf]
    %v2312 = vld [vmem:[#allocation10 + $0x80] sm:$0xf]
    %v2313 = vld [vmem:[#allocation10 + $0x84] sm:$0xf]
    %v2314 = vld [vmem:[#allocation10 + $0x88] sm:$0xf]
    %v2315 = vld [vmem:[#allocation10 + $0x8c] sm:$0xf]
    %v2316 = vld [vmem:[#allocation10 + $0x90] sm:$0xf]
    %v2317 = vld [vmem:[#allocation10 + $0x94] sm:$0xf]
    %v2318 = vld [vmem:[#allocation10 + $0x98] sm:$0xf]
    %v2319 = vld [vmem:[#allocation10 + $0x9c] sm:$0xf]
    %v2320 = vld [vmem:[#allocation10 + $0xa0] sm:$0xf]
    %v2321 = vld [vmem:[#allocation10 + $0xa4] sm:$0xf]
    %v2322 = vld [vmem:[#allocation10 + $0xa8] sm:$0xf]
    %v2323 = vld [vmem:[#allocation10 + $0xac] sm:$0xf]
    %v2324 = vld [vmem:[#allocation10 + $0xb0] sm:$0xf]
    %v2325 = vld [vmem:[#allocation10 + $0xb4] sm:$0xf]
    %v2326 = vld [vmem:[#allocation10 + $0xb8] sm:$0xf]
    %v2327 = vld [vmem:[#allocation10 + $0xbc] sm:$0xf]
    %v2328 = vld [vmem:[#allocation10 + $0xc0] sm:$0xf]
    %v2329 = vld [vmem:[#allocation10 + $0xc4] sm:$0xf]
    %v2330 = vld [vmem:[#allocation10 + $0xc8] sm:$0xf]
    %v2331 = vld [vmem:[#allocation10 + $0xcc] sm:$0xf]
    %v2332 = vld [vmem:[#allocation10 + $0xd0] sm:$0xf]
    %v2333 = vld [vmem:[#allocation10 + $0xd4] sm:$0xf]
    %v2334 = vld [vmem:[#allocation10 + $0xd8] sm:$0xf]
    %v2335 = vld [vmem:[#allocation10 + $0xdc] sm:$0xf]
    %v2336 = vld [vmem:[#allocation10 + $0xe0] sm:$0xf]
    %v2337 = vld [vmem:[#allocation10 + $0xe4] sm:$0xf]
    %v2338 = vld [vmem:[#allocation10 + $0xe8] sm:$0xf]
    %v2339 = vld [vmem:[#allocation10 + $0xec] sm:$0xf]
    %v2340 = vld [vmem:[#allocation10 + $0xf0] sm:$0xf]
    %v2341 = vld [vmem:[#allocation10 + $0xf4] sm:$0xf]
    %v2342 = vld [vmem:[#allocation10 + $0xf8] sm:$0xf]
    %v2343 = vld [vmem:[#allocation10 + $0xfc] sm:$0xf]
    %v2344 = vld [vmem:[#allocation12] sm:$0x1]
    %v2346 = vlaneseq
    %v2347 = vshrl.u32 %v2346, 7
    %v2348 = vsub.s32 0, %v2347
    %v2349 = vrot.slane %v2344, %v2348
    %v2415 = vunpack.c.l.b16 %v2280
    %v2416 = vunpack.c.l.b16 %v2281
    %v2417 = vunpack.c.l.b16 %v2282
    %v2418 = vunpack.c.l.b16 %v2283
    %v2419 = vunpack.c.l.b16 %v2284
    %v2420 = vunpack.c.l.b16 %v2285
    %v2421 = vunpack.c.l.b16 %v2286
    %v2422 = vunpack.c.l.b16 %v2287
    %v2423 = vunpack.c.l.b16 %v2288
    %v2424 = vunpack.c.l.b16 %v2289
    %v2425 = vunpack.c.l.b16 %v2290
    %v2426 = vunpack.c.l.b16 %v2291
    %v2427 = vunpack.c.l.b16 %v2292
    %v2428 = vunpack.c.l.b16 %v2293
    %v2429 = vunpack.c.l.b16 %v2294
    %v2430 = vunpack.c.l.b16 %v2295
    %v2431 = vunpack.c.l.b16 %v2296
    %v2432 = vunpack.c.l.b16 %v2297
    %v2433 = vunpack.c.l.b16 %v2298
    %v2434 = vunpack.c.l.b16 %v2299
    %v2435 = vunpack.c.l.b16 %v2300
    %v2436 = vunpack.c.l.b16 %v2301
    %v2437 = vunpack.c.l.b16 %v2302
    %v2438 = vunpack.c.l.b16 %v2303
    %v2439 = vunpack.c.l.b16 %v2304
    %v2440 = vunpack.c.l.b16 %v2305
    %v2441 = vunpack.c.l.b16 %v2306
    %v2442 = vunpack.c.l.b16 %v2307
    %v2443 = vunpack.c.l.b16 %v2308
    %v2444 = vunpack.c.l.b16 %v2309
    %v2445 = vunpack.c.l.b16 %v2310
    %v2446 = vunpack.c.l.b16 %v2311
    %v2447 = vunpack.c.l.b16 %v2312
    %v2448 = vunpack.c.l.b16 %v2313
    %v2449 = vunpack.c.l.b16 %v2314
    %v2450 = vunpack.c.l.b16 %v2315
    %v2451 = vunpack.c.l.b16 %v2316
    %v2452 = vunpack.c.l.b16 %v2317
    %v2453 = vunpack.c.l.b16 %v2318
    %v2454 = vunpack.c.l.b16 %v2319
    %v2455 = vunpack.c.l.b16 %v2320
    %v2456 = vunpack.c.l.b16 %v2321
    %v2457 = vunpack.c.l.b16 %v2322
    %v2458 = vunpack.c.l.b16 %v2323
    %v2459 = vunpack.c.l.b16 %v2324
    %v2460 = vunpack.c.l.b16 %v2325
    %v2461 = vunpack.c.l.b16 %v2326
    %v2462 = vunpack.c.l.b16 %v2327
    %v2463 = vunpack.c.l.b16 %v2328
    %v2464 = vunpack.c.l.b16 %v2329
    %v2465 = vunpack.c.l.b16 %v2330
    %v2466 = vunpack.c.l.b16 %v2331
    %v2467 = vunpack.c.l.b16 %v2332
    %v2468 = vunpack.c.l.b16 %v2333
    %v2469 = vunpack.c.l.b16 %v2334
    %v2470 = vunpack.c.l.b16 %v2335
    %v2471 = vunpack.c.l.b16 %v2336
    %v2472 = vunpack.c.l.b16 %v2337
    %v2473 = vunpack.c.l.b16 %v2338
    %v2474 = vunpack.c.l.b16 %v2339
    %v2475 = vunpack.c.l.b16 %v2340
    %v2476 = vunpack.c.l.b16 %v2341
    %v2477 = vunpack.c.l.b16 %v2342
    %v2478 = vunpack.c.l.b16 %v2343
    %v2479 = vpack.c.b16 %v2416, %v2415
    %v2480 = vpack.c.b16 %v2418, %v2417
    %v2481 = vpack.c.b16 %v2420, %v2419
    %v2482 = vpack.c.b16 %v2422, %v2421
    %v2483 = vpack.c.b16 %v2424, %v2423
    %v2484 = vpack.c.b16 %v2426, %v2425
    %v2485 = vpack.c.b16 %v2428, %v2427
    %v2486 = vpack.c.b16 %v2430, %v2429
    %v2487 = vpack.c.b16 %v2432, %v2431
    %v2488 = vpack.c.b16 %v2434, %v2433
    %v2489 = vpack.c.b16 %v2436, %v2435
    %v2490 = vpack.c.b16 %v2438, %v2437
    %v2491 = vpack.c.b16 %v2440, %v2439
    %v2492 = vpack.c.b16 %v2442, %v2441
    %v2493 = vpack.c.b16 %v2444, %v2443
    %v2494 = vpack.c.b16 %v2446, %v2445
    %v2495 = vpack.c.b16 %v2448, %v2447
    %v2496 = vpack.c.b16 %v2450, %v2449
    %v2497 = vpack.c.b16 %v2452, %v2451
    %v2498 = vpack.c.b16 %v2454, %v2453
    %v2499 = vpack.c.b16 %v2456, %v2455
    %v2500 = vpack.c.b16 %v2458, %v2457
    %v2501 = vpack.c.b16 %v2460, %v2459
    %v2502 = vpack.c.b16 %v2462, %v2461
    %v2503 = vpack.c.b16 %v2464, %v2463
    %v2504 = vpack.c.b16 %v2466, %v2465
    %v2505 = vpack.c.b16 %v2468, %v2467
    %v2506 = vpack.c.b16 %v2470, %v2469
    %v2507 = vpack.c.b16 %v2472, %v2471
    %v2508 = vpack.c.b16 %v2474, %v2473
    %v2509 = vpack.c.b16 %v2476, %v2475
    %v2510 = vpack.c.b16 %v2478, %v2477
    %2543 = vmatprep.subr.bf16.mxu0 0
    %2544 = vmatpush1.bf16.msra.mxu0 %v2479
    %2545 = vmatprep.subr.bf16.mxu0 0
    %2546 = vmatpush1.bf16.msra.mxu0 %v2480
    %2547 = vmatprep.subr.bf16.mxu0 0
    %2548 = vmatpush1.bf16.msra.mxu0 %v2481
    %2549 = vmatprep.subr.bf16.mxu0 0
    %2550 = vmatpush1.bf16.msra.mxu0 %v2482
    %2551 = vmatprep.subr.bf16.mxu0 0
    %2552 = vmatpush1.bf16.msra.mxu0 %v2483
    %2553 = vmatprep.subr.bf16.mxu0 0
    %2554 = vmatpush1.bf16.msra.mxu0 %v2484
    %2555 = vmatprep.subr.bf16.mxu0 0
    %2556 = vmatpush1.bf16.msra.mxu0 %v2485
    %2557 = vmatprep.subr.bf16.mxu0 0
    %2558 = vmatpush1.bf16.msra.mxu0 %v2486
    %2559 = vmatprep.subr.bf16.mxu0 0
    %2560 = vmatpush1.bf16.msra.mxu0 %v2487
    %2561 = vmatprep.subr.bf16.mxu0 0
    %2562 = vmatpush1.bf16.msra.mxu0 %v2488
    %2563 = vmatprep.subr.bf16.mxu0 0
    %2564 = vmatpush1.bf16.msra.mxu0 %v2489
    %2565 = vmatprep.subr.bf16.mxu0 0
    %2566 = vmatpush1.bf16.msra.mxu0 %v2490
    %2567 = vmatprep.subr.bf16.mxu0 0
    %2568 = vmatpush1.bf16.msra.mxu0 %v2491
    %2569 = vmatprep.subr.bf16.mxu0 0
    %2570 = vmatpush1.bf16.msra.mxu0 %v2492
    %2571 = vmatprep.subr.bf16.mxu0 0
    %2572 = vmatpush1.bf16.msra.mxu0 %v2493
    %2573 = vmatprep.subr.bf16.mxu0 0
    %2574 = vmatpush1.bf16.msra.mxu0 %v2494
    %2575 = vmatprep.mubr.bf16.mxu0 %v2277
    %2576 = vmatmul.mubr.bf16.gmra.mrb[0].mxu0 %v2276
    %v2577 = vpop.f32.mrb[0].mxu0
    %v2578 = vadd.f32 %v2349, %v2577
    %v2579 = vpop.f32.mrb[0].mxu0
    %v2580 = vpop.f32.mrb[0].mxu0
    %v2581 = vadd.f32 %v2349, %v2580
    %v2582 = vpop.f32.mrb[0].mxu0
    %2583 = vdwg.mxu0
    %2584 = vmatprep.subr.bf16.mxu0 0
    %2585 = vmatpush1.bf16.msra.mxu0 %v2495
    %2586 = vmatprep.subr.bf16.mxu0 0
    %2587 = vmatpush1.bf16.msra.mxu0 %v2496
    %2588 = vmatprep.subr.bf16.mxu0 0
    %2589 = vmatpush1.bf16.msra.mxu0 %v2497
    %2590 = vmatprep.subr.bf16.mxu0 0
    %2591 = vmatpush1.bf16.msra.mxu0 %v2498
    %2592 = vmatprep.subr.bf16.mxu0 0
    %2593 = vmatpush1.bf16.msra.mxu0 %v2499
    %2594 = vmatprep.subr.bf16.mxu0 0
    %2595 = vmatpush1.bf16.msra.mxu0 %v2500
    %2596 = vmatprep.subr.bf16.mxu0 0
    %2597 = vmatpush1.bf16.msra.mxu0 %v2501
    %2598 = vmatprep.subr.bf16.mxu0 0
    %2599 = vmatpush1.bf16.msra.mxu0 %v2502
    %2600 = vmatprep.subr.bf16.mxu0 0
    %2601 = vmatpush1.bf16.msra.mxu0 %v2503
    %2602 = vmatprep.subr.bf16.mxu0 0
    %2603 = vmatpush1.bf16.msra.mxu0 %v2504
    %2604 = vmatprep.subr.bf16.mxu0 0
    %2605 = vmatpush1.bf16.msra.mxu0 %v2505
    %2606 = vmatprep.subr.bf16.mxu0 0
    %2607 = vmatpush1.bf16.msra.mxu0 %v2506
    %2608 = vmatprep.subr.bf16.mxu0 0
    %2609 = vmatpush1.bf16.msra.mxu0 %v2507
    %2610 = vmatprep.subr.bf16.mxu0 0
    %2611 = vmatpush1.bf16.msra.mxu0 %v2508
    %2612 = vmatprep.subr.bf16.mxu0 0
    %2613 = vmatpush1.bf16.msra.mxu0 %v2509
    %2614 = vmatprep.subr.bf16.mxu0 0
    %2615 = vmatpush1.bf16.msra.mxu0 %v2510
    %2616 = vmatprep.mubr.bf16.mxu0 %v2279
    %2617 = vmatmul.mubr.bf16.gmra.mrb[0].mxu0 %v2278
    %v2618 = vpop.f32.mrb[0].mxu0
    %v2619 = vadd.f32 %v2578, %v2618
    %v2620 = vpop.f32.mrb[0].mxu0
    %v2621 = vpop.f32.mrb[0].mxu0
    %v2622 = vadd.f32 %v2581, %v2621
    %v2623 = vpop.f32.mrb[0].mxu0
    %2624 = vdwg.mxu0
    %v2625 = vtanh.pop %v2619
    %v2626 = vtanh.pop %v2622
    %2627 = vst [vmem:[%s9] sm:$0xff] %v2625
    %2628 = vst [vmem:[%s9 + $0x8] sm:$0xff] %v2626
    // Predicated region
    $region66: #{dqn_forward.1} parent=1 // pred_check
      _
    $region67: #{dqn_forward.1} parent=1 // pred_check_branch
      %2630 = sbr.rel (0) target = $region69
    $region68: #{dqn_forward.1} parent=1 // pred_region
      _
    $region69: #{dqn_forward.1} parent=1 // pred_fallthru
      _
    // Predicated region
    $region70: #{dqn_forward.1} parent=1 // pred_check
      _
    $region71: #{dqn_forward.1} parent=1 // pred_check_branch
      %2632 = sbr.rel (0) target = $region73
    $region72: #{dqn_forward.1} parent=1 // pred_region
      _
    $region73: #{dqn_forward.1} parent=1 // pred_fallthru
      _
    %2633 = vsyncpa [#allocation3], 1
    %2634 = vsyncpa [#allocation5], 1
    %2635 = vsyncpa [#allocation8], 1
    %2636 = vsyncpa [#allocation11], 1

</llo_original>
